<compile_context>
chip_gen: v7x
topology: tpu7x:2x2x1
jax: 0.10.0
libtpu: 0.0.40
codegen_flags: <defaults>
</compile_context>

<pallas_src>
import math

import jax
import jax.numpy as jnp
from jax.experimental import pallas as pl
from jax.experimental.pallas import tpu as pltpu


def _round_up(x, m):
    return (x + m - 1) // m * m


def _pad_lane(d):
    # Lane-dense padding. Use 256 granularity once the dim is large enough to
    # feed a full 256-wide MXU pass (v6e/v7x); 128 keeps tiny dims cheap and
    # matches v5e's 128x128 MXU.
    return _round_up(d, 256) if d >= 256 else _round_up(d, 128)


def _vmem_budget_bytes():
    # Generation-aware scoped-VMEM budget: ~75% of physical VMEM, capped at
    # 100 MiB -> ~96 MiB on v5e/v6e (128 MiB VMEM), ~48 MiB on v7x (64 MiB).
    cap = 64 * 1024 * 1024
    try:
        cap = int(pltpu.get_tpu_info().vmem_capacity_bytes)
    except Exception:
        pass
    return max(32 * 1024 * 1024, min(cap * 3 // 4, 100 * 1024 * 1024))


def _graphsage_kernel(adj_ref, feats_ref, xb_ref, invdeg_ref,
                      ws_t_ref, wn_t_ref, wc_t_ref, out_ref,
                      acc_ref, self_ref):
    """Grid = (B tiles, N tiles). N axis (axis 1) is the reduction axis."""
    k = pl.program_id(1)

    @pl.when(k == 0)
    def _prologue():
        acc_ref[...] = jnp.zeros_like(acc_ref)
        # k-invariant self matmul hoisted out of the epilogue: overlaps with
        # the reduction pipeline's DMAs instead of serializing at the tail.
        self_ref[...] = jnp.dot(xb_ref[...], ws_t_ref[...],
                                preferred_element_type=jnp.float32)

    # Partial neighbor-feature sum for this N tile: (tb, tn) @ (tn, Fp) -> f32.
    acc_ref[...] += jnp.dot(adj_ref[...], feats_ref[...],
                            preferred_element_type=jnp.float32)

    @pl.when(k == pl.num_programs(1) - 1)
    def _epilogue():
        # Mean aggregation on the f32 accumulator (exact inv_deg from wrapper).
        neigh = (acc_ref[...] * invdeg_ref[...]).astype(wn_t_ref.dtype)   # (tb, Fp)

        # embeds.T = relu(xb @ W_self.T + neigh @ W_neigh.T)              # (tb, Ep)
        h = self_ref[...] + jnp.dot(neigh, wn_t_ref[...],
                                    preferred_element_type=jnp.float32)
        h = jnp.maximum(h, 0.0)                                           # relu in f32

        # forward output = (W_cls @ embeds).T = embeds.T @ W_cls.T        # (tb, Cp)
        out_ref[...] = jnp.dot(h.astype(wc_t_ref.dtype), wc_t_ref[...],
                               preferred_element_type=jnp.float32)


def graphsage_forward(x_batch, adj, feats, w_enc, w_cls, *, tb=None, tn=None):
    """Pallas-backed GraphSage forward.

    x_batch: (B, F) self features of queried nodes
    adj    : (B, N) 0/1 neighbor mask (mean-aggregated)
    feats  : (N, F) full node-feature table
    w_enc  : (E, 2F) encoder weight (self | neighbor halves)
    w_cls  : (C, E)  classifier weight
    returns: (B, C) float32
    """
    B, F = x_batch.shape
    N = feats.shape[0]
    E, two_f = w_enc.shape
    C = w_cls.shape[0]
    assert two_f == 2 * F and adj.shape == (B, N) and w_cls.shape == (C, E)

    f32, bf16 = jnp.float32, jnp.bfloat16

    # ---- lane-dense padded dims --------------------------------------------
    Fp = _pad_lane(F)
    Ep = _pad_lane(E)
    Cp = _pad_lane(C)

    # ---- tile sizes ----------------------------------------------------------
    # tb: feed the MXU M dimension wide (up to 256 rows) and use as few batch
    # tiles as possible so feats is re-streamed at most Bp//tb times.  Multiple
    # of 16 for bf16 sublane packing.  (On v7x with huge B, keeping Bp//tb a
    # multiple of 2 lets the "parallel" axis shard across both TensorCores.)
    if tb is None:
        tb = min(_round_up(B, 16), 256)
    else:
        tb = min(_round_up(tb, 16), 256)
    Bp = _round_up(B, tb)

    vmem_budget = _vmem_budget_bytes()

    # Fixed VMEM residents (weights are single-buffered via pl.Buffered(1)).
    fixed_bytes = (2 * (2 * Fp * Ep + Ep * Cp)       # bf16 weights, 1 buffer each
                   + 2 * (2 * tb * Fp + 4 * tb)      # xb (bf16) + inv_deg (f32), 2 bufs
                   + 4 * tb * Fp + 4 * tb * Ep       # f32 scratch accumulators
                   + 2 * 4 * tb * Cp)                # f32 output, double buffered

    if tn is None:
        # Spend remaining budget on the streamed (adj, feats) tiles
        # (double-buffered), then clamp to [128, 2048].
        per_row = 2 * 2 * (tb + Fp)                  # 2 buffers * bf16 * (adj + feats row)
        tn_fit = max(vmem_budget - fixed_bytes, per_row * 128) // per_row
        tn = max(128, min(2048, (tn_fit // 128) * 128))
    tn = min(tn, _round_up(N, 128))
    Np = _round_up(N, tn)

    # ---- wrapper-side glue: exact inv_deg, padding, casts, pre-transposes ---
    deg = jnp.maximum(adj.astype(f32).sum(axis=-1, keepdims=True), 1.0)
    inv_deg = (1.0 / deg).astype(f32)                                   # (B, 1)

    adj_p = jnp.zeros((Bp, Np), bf16).at[:B, :N].set(adj.astype(bf16))
    feats_p = jnp.zeros((Np, Fp), bf16).at[:N, :F].set(feats.astype(bf16))
    xb_p = jnp.zeros((Bp, Fp), bf16).at[:B, :F].set(x_batch.astype(bf16))
    invdeg_p = jnp.ones((Bp, 1), f32).at[:B, :].set(inv_deg)

    w_self_t = jnp.zeros((Fp, Ep), bf16).at[:F, :E].set(w_enc[:, :F].T.astype(bf16))
    w_neigh_t = jnp.zeros((Fp, Ep), bf16).at[:F, :E].set(w_enc[:, F:].T.astype(bf16))
    w_cls_t = jnp.zeros((Ep, Cp), bf16).at[:E, :C].set(w_cls.T.astype(bf16))

    n_i = Bp // tb
    grid = (n_i, Np // tn)

    cost = pl.CostEstimate(
        flops=(2 * Bp * Np * Fp            # adj @ feats
               + 2 * 2 * Bp * Fp * Ep      # self + neighbor encoder matmuls
               + 2 * Bp * Ep * Cp),        # classifier
        transcendentals=0,
        # feats is re-streamed once per batch tile (its index_map ignores i);
        # everything else is effectively fetched once.
        bytes_accessed=(2 * adj_p.size
                        + 2 * feats_p.size * n_i
                        + 2 * (xb_p.size + w_self_t.size + w_neigh_t.size
                               + w_cls_t.size)
                        + 4 * (invdeg_p.size + Bp * Cp)),
    )

    def _call(single_buffer_weights):
        def w_spec(shape):
            # Grid-constant weights: single-buffering saves VMEM with zero
            # correctness impact (block index never changes).
            if single_buffer_weights:
                return pl.BlockSpec(shape, lambda i, k: (0, 0),
                                    pipeline_mode=pl.Buffered(1))
            return pl.BlockSpec(shape, lambda i, k: (0, 0))

        return pl.pallas_call(
            _graphsage_kernel,
            out_shape=jax.ShapeDtypeStruct((Bp, Cp), f32),
            grid_spec=pltpu.PrefetchScalarGridSpec(
                num_scalar_prefetch=0,
                grid=grid,
                in_specs=[
                    pl.BlockSpec((tb, tn), lambda i, k: (i, k)),    # adj tile
                    pl.BlockSpec((tn, Fp), lambda i, k: (k, 0)),    # feats tile
                    pl.BlockSpec((tb, Fp), lambda i, k: (i, 0)),    # x_batch
                    pl.BlockSpec((tb, 1), lambda i, k: (i, 0)),     # inv_deg
                    w_spec((Fp, Ep)),                               # W_self.T
                    w_spec((Fp, Ep)),                               # W_neigh.T
                    w_spec((Ep, Cp)),                               # W_cls.T
                ],
                out_specs=pl.BlockSpec((tb, Cp), lambda i, k: (i, 0)),
                scratch_shapes=[pltpu.VMEM((tb, Fp), jnp.float32),   # neigh_sum acc
                                pltpu.VMEM((tb, Ep), jnp.float32)],  # self matmul acc
            ),
            compiler_params=pltpu.CompilerParams(
                dimension_semantics=("parallel", "arbitrary"),
                vmem_limit_bytes=vmem_budget,
            ),
            cost_estimate=cost,
        )(adj_p, feats_p, xb_p, invdeg_p, w_self_t, w_neigh_t, w_cls_t)

    try:
        out_padded = _call(True)
    except Exception:
        # Fallback for builds that reject pipeline_mode=pl.Buffered(1);
        # identical semantics, weights just stay double-buffered.
        out_padded = _call(False)

    return out_padded[:B, :C]


def _xavier_uniform(key, shape):
    fan_out, fan_in = shape
    bound = math.sqrt(6.0 / (fan_in + fan_out))
    return jax.random.uniform(key, shape, jnp.float32, -bound, bound)


def _reference(x_batch, adj, feats, w_enc, w_cls):
    deg = jnp.maximum(adj.sum(-1, keepdims=True), 1.0)
    neigh = (adj @ feats) / deg
    combined = jnp.concatenate([x_batch, neigh], axis=1)      # (B, 2F)
    embeds = jnp.maximum(w_enc @ combined.T, 0.0)             # (E, B)
    scores = w_cls @ embeds                                   # (C, B)
    return scores.T                                           # (B, C)


if __name__ == "__main__":
    # Small, deliberately non-aligned problem (exercises padding).
    N, F, E, C, B = 320, 48, 40, 7, 24

    key = jax.random.PRNGKey(0)
    k_feat, k_adj, k_enc, k_cls, k_nodes = jax.random.split(key, 5)

    feats = jax.random.normal(k_feat, (N, F), jnp.float32)
    adj = (jax.random.uniform(k_adj, (B, N)) < 0.15).astype(jnp.float32)
    nodes = jax.random.randint(k_nodes, (B,), 0, N)
    x_batch = feats[nodes]

    w_enc = _xavier_uniform(k_enc, (E, 2 * F))   # Encoder.weight
    w_cls = _xavier_uniform(k_cls, (C, E))       # GraphSage.weight (xavier_uniform_)

    ref = _reference(x_batch, adj, feats, w_enc, w_cls)

    # 1) Auto tile selection: single batch tile, VMEM-budgeted tn (1 k-step here).
    out = jax.block_until_ready(
        graphsage_forward(x_batch, adj, feats, w_enc, w_cls))
    assert out.shape == (B, C)
    # bf16 inputs with f32 accumulation -> loosened tolerance vs. the f32 reference.
    assert jnp.allclose(out, ref, atol=5e-2, rtol=5e-2), float(
        jnp.max(jnp.abs(out - ref)))

    # 2) Forced small tn: exercises the multi-step reduction (prologue/epilogue
    #    accumulation path across several k iterations).
    out2 = jax.block_until_ready(
        graphsage_forward(x_batch, adj, feats, w_enc, w_cls, tn=128))
    assert jnp.allclose(out2, ref, atol=5e-2, rtol=5e-2), float(
        jnp.max(jnp.abs(out2 - ref)))

    print("KERNEL_OK")
</pallas_src>

<mosaic_0001>
module attributes {stable_mosaic.version = 11 : i64} {
  func.func @_graphsage_kernel(%arg0: i32, %arg1: i32, %arg2: memref<32x384xbf16, #tpu.memory_space<vmem>>, %arg3: memref<384x128xbf16, #tpu.memory_space<vmem>>, %arg4: memref<32x128xbf16, #tpu.memory_space<vmem>>, %arg5: memref<32x1xf32, #tpu.memory_space<vmem>>, %arg6: memref<128x128xbf16, #tpu.memory_space<vmem>>, %arg7: memref<128x128xbf16, #tpu.memory_space<vmem>>, %arg8: memref<128x128xbf16, #tpu.memory_space<vmem>>, %arg9: memref<32x128xf32, #tpu.memory_space<vmem>>, %arg10: memref<32x128xf32, #tpu.memory_space<vmem>>, %arg11: memref<32x128xf32, #tpu.memory_space<vmem>>) attributes {dimension_semantics = [#tpu.dimension_semantics<parallel>, #tpu.dimension_semantics<arbitrary>], iteration_bounds = array<i64: 1, 1>, scalar_prefetch = 0 : i64, scratch_operands = 2 : i64, tpu.core_type = #tpu.core_type<tc>, window_params = [{transform_indices = @transform_0, window_bounds = array<i64: 32, 384>}, {transform_indices = @transform_1, window_bounds = array<i64: 384, 128>}, {transform_indices = @transform_2, window_bounds = array<i64: 32, 128>}, {transform_indices = @transform_3, window_bounds = array<i64: 32, 1>}, {pipeline_mode = #tpu.pipeline_mode<synchronous>, transform_indices = @transform_4, window_bounds = array<i64: 128, 128>}, {pipeline_mode = #tpu.pipeline_mode<synchronous>, transform_indices = @transform_5, window_bounds = array<i64: 128, 128>}, {pipeline_mode = #tpu.pipeline_mode<synchronous>, transform_indices = @transform_6, window_bounds = array<i64: 128, 128>}, {transform_indices = @transform_7, window_bounds = array<i64: 32, 128>}]} {
    %c0_i32 = arith.constant 0 : i32
    %0 = arith.cmpi eq, %arg1, %c0_i32 : i32
    %1 = arith.extui %0 : i1 to i32
    %c0_i32_0 = arith.constant 0 : i32
    %2 = arith.cmpi ne, %1, %c0_i32_0 : i32
    scf.if %2 {
      %cst_10 = arith.constant 0.000000e+00 : f32
      %12 = vector.broadcast %cst_10 : f32 to vector<32x128xf32>
      %c0_11 = arith.constant 0 : index
      %c0_12 = arith.constant 0 : index
      %13 = vector.load %arg10[%c0_11, %c0_12] : memref<32x128xf32, #tpu.memory_space<vmem>>, vector<32x128xf32>
      tpu.vector_store %arg10[%c0_11, %c0_12], %12 {strides = array<i32>} : memref<32x128xf32, #tpu.memory_space<vmem>>, vector<32x128xf32>,
      %c0_13 = arith.constant 0 : index
      %c0_14 = arith.constant 0 : index
      %14 = vector.load %arg4[%c0_13, %c0_14] : memref<32x128xbf16, #tpu.memory_space<vmem>>, vector<32x128xbf16>
      %c0_15 = arith.constant 0 : index
      %c0_16 = arith.constant 0 : index
      %15 = vector.load %arg6[%c0_15, %c0_16] : memref<128x128xbf16, #tpu.memory_space<vmem>>, vector<128x128xbf16>
      %cst_17 = arith.constant dense<0.000000e+00> : vector<32x128xf32>
      %16 = tpu.matmul %14, %15, %cst_17 {dimension_numbers = #tpu.dot_dimension_numbers<[1], [0], [0], [1], [0, 0, 1, 1], [], []>} : vector<32x128xbf16>, vector<128x128xbf16>, vector<32x128xf32> -> vector<32x128xf32>
      %c0_18 = arith.constant 0 : index
      %c0_19 = arith.constant 0 : index
      %17 = vector.load %arg11[%c0_18, %c0_19] : memref<32x128xf32, #tpu.memory_space<vmem>>, vector<32x128xf32>
      tpu.vector_store %arg11[%c0_18, %c0_19], %16 {strides = array<i32>} : memref<32x128xf32, #tpu.memory_space<vmem>>, vector<32x128xf32>,
    } else {
    }
    %c0 = arith.constant 0 : index
    %c0_1 = arith.constant 0 : index
    %3 = vector.load %arg10[%c0, %c0_1] : memref<32x128xf32, #tpu.memory_space<vmem>>, vector<32x128xf32>
    %c0_2 = arith.constant 0 : index
    %c0_3 = arith.constant 0 : index
    %4 = vector.load %arg2[%c0_2, %c0_3] : memref<32x384xbf16, #tpu.memory_space<vmem>>, vector<32x384xbf16>
    %c0_4 = arith.constant 0 : index
    %c0_5 = arith.constant 0 : index
    %5 = vector.load %arg3[%c0_4, %c0_5] : memref<384x128xbf16, #tpu.memory_space<vmem>>, vector<384x128xbf16>
    %cst = arith.constant dense<0.000000e+00> : vector<32x128xf32>
    %6 = tpu.matmul %4, %5, %cst {dimension_numbers = #tpu.dot_dimension_numbers<[1], [0], [0], [1], [0, 0, 1, 1], [], []>} : vector<32x384xbf16>, vector<384x128xbf16>, vector<32x128xf32> -> vector<32x128xf32>
    %7 = arith.addf %3, %6 : vector<32x128xf32>
    %c0_6 = arith.constant 0 : index
    %c0_7 = arith.constant 0 : index
    %8 = vector.load %arg10[%c0_6, %c0_7] : memref<32x128xf32, #tpu.memory_space<vmem>>, vector<32x128xf32>
    tpu.vector_store %arg10[%c0_6, %c0_7], %7 {strides = array<i32>} : memref<32x128xf32, #tpu.memory_space<vmem>>, vector<32x128xf32>,
    %c0_i32_8 = arith.constant 0 : i32
    %9 = arith.cmpi eq, %arg1, %c0_i32_8 : i32
    %10 = arith.extui %9 : i1 to i32
    %c0_i32_9 = arith.constant 0 : i32
    %11 = arith.cmpi ne, %10, %c0_i32_9 : i32
    scf.if %11 {
      %c0_10 = arith.constant 0 : index
      %c0_11 = arith.constant 0 : index
      %12 = vector.load %arg10[%c0_10, %c0_11] : memref<32x128xf32, #tpu.memory_space<vmem>>, vector<32x128xf32>
      %c0_12 = arith.constant 0 : index
      %c0_13 = arith.constant 0 : index
      %13 = vector.load %arg5[%c0_12, %c0_13] : memref<32x1xf32, #tpu.memory_space<vmem>>, vector<32x1xf32>
      %14 = vector.broadcast %13 : vector<32x1xf32> to vector<32x128xf32>
      %15 = arith.mulf %12, %14 : vector<32x128xf32>
      %16 = arith.truncf %15 : vector<32x128xf32> to vector<32x128xbf16>
      %c0_14 = arith.constant 0 : index
      %c0_15 = arith.constant 0 : index
      %17 = vector.load %arg11[%c0_14, %c0_15] : memref<32x128xf32, #tpu.memory_space<vmem>>, vector<32x128xf32>
      %c0_16 = arith.constant 0 : index
      %c0_17 = arith.constant 0 : index
      %18 = vector.load %arg7[%c0_16, %c0_17] : memref<128x128xbf16, #tpu.memory_space<vmem>>, vector<128x128xbf16>
      %cst_18 = arith.constant dense<0.000000e+00> : vector<32x128xf32>
      %19 = tpu.matmul %16, %18, %cst_18 {dimension_numbers = #tpu.dot_dimension_numbers<[1], [0], [0], [1], [0, 0, 1, 1], [], []>} : vector<32x128xbf16>, vector<128x128xbf16>, vector<32x128xf32> -> vector<32x128xf32>
      %20 = arith.addf %17, %19 : vector<32x128xf32>
      %cst_19 = arith.constant 0.000000e+00 : f32
      %21 = vector.broadcast %cst_19 : f32 to vector<32x128xf32>
      %22 = arith.maximumf %20, %21 : vector<32x128xf32>
      %23 = arith.truncf %22 : vector<32x128xf32> to vector<32x128xbf16>
      %c0_20 = arith.constant 0 : index
      %c0_21 = arith.constant 0 : index
      %24 = vector.load %arg8[%c0_20, %c0_21] : memref<128x128xbf16, #tpu.memory_space<vmem>>, vector<128x128xbf16>
      %cst_22 = arith.constant dense<0.000000e+00> : vector<32x128xf32>
      %25 = tpu.matmul %23, %24, %cst_22 {dimension_numbers = #tpu.dot_dimension_numbers<[1], [0], [0], [1], [0, 0, 1, 1], [], []>} : vector<32x128xbf16>, vector<128x128xbf16>, vector<32x128xf32> -> vector<32x128xf32>
      %c0_23 = arith.constant 0 : index
      %c0_24 = arith.constant 0 : index
      %26 = vector.load %arg9[%c0_23, %c0_24] : memref<32x128xf32, #tpu.memory_space<vmem>>, vector<32x128xf32>
      tpu.vector_store %arg9[%c0_23, %c0_24], %25 {strides = array<i32>} : memref<32x128xf32, #tpu.memory_space<vmem>>, vector<32x128xf32>,
    } else {
    }
    return
  }
  func.func @transform_0(%arg0: i32, %arg1: i32) -> (i32, i32) {
    %c0_i32 = arith.constant 0 : i32
    return %arg0, %arg1 : i32, i32
  }
  func.func @transform_1(%arg0: i32, %arg1: i32) -> (i32, i32) {
    %c0_i32 = arith.constant 0 : i32
    %c0_i32_0 = arith.constant 0 : i32
    return %arg1, %c0_i32 : i32, i32
  }
  func.func @transform_2(%arg0: i32, %arg1: i32) -> (i32, i32) {
    %c0_i32 = arith.constant 0 : i32
    %c0_i32_0 = arith.constant 0 : i32
    return %arg0, %c0_i32 : i32, i32
  }
  func.func @transform_3(%arg0: i32, %arg1: i32) -> (i32, i32) {
    %c0_i32 = arith.constant 0 : i32
    %c0_i32_0 = arith.constant 0 : i32
    return %arg0, %c0_i32 : i32, i32
  }
  func.func @transform_4(%arg0: i32, %arg1: i32) -> (i32, i32) {
    %c0_i32 = arith.constant 0 : i32
    %c0_i32_0 = arith.constant 0 : i32
    %c0_i32_1 = arith.constant 0 : i32
    return %c0_i32, %c0_i32_0 : i32, i32
  }
  func.func @transform_5(%arg0: i32, %arg1: i32) -> (i32, i32) {
    %c0_i32 = arith.constant 0 : i32
    %c0_i32_0 = arith.constant 0 : i32
    %c0_i32_1 = arith.constant 0 : i32
    return %c0_i32, %c0_i32_0 : i32, i32
  }
  func.func @transform_6(%arg0: i32, %arg1: i32) -> (i32, i32) {
    %c0_i32 = arith.constant 0 : i32
    %c0_i32_0 = arith.constant 0 : i32
    %c0_i32_1 = arith.constant 0 : i32
    return %c0_i32, %c0_i32_0 : i32, i32
  }
  func.func @transform_7(%arg0: i32, %arg1: i32) -> (i32, i32) {
    %c0_i32 = arith.constant 0 : i32
    %c0_i32_0 = arith.constant 0 : i32
    return %arg0, %c0_i32 : i32, i32
  }
}

module attributes {stable_mosaic.version = 11 : i64} {
  func.func @_graphsage_kernel(%arg0: i32, %arg1: i32, %arg2: memref<32x384xbf16, #tpu.memory_space<vmem>>, %arg3: memref<384x128xbf16, #tpu.memory_space<vmem>>, %arg4: memref<32x128xbf16, #tpu.memory_space<vmem>>, %arg5: memref<32x1xf32, #tpu.memory_space<vmem>>, %arg6: memref<128x128xbf16, #tpu.memory_space<vmem>>, %arg7: memref<128x128xbf16, #tpu.memory_space<vmem>>, %arg8: memref<128x128xbf16, #tpu.memory_space<vmem>>, %arg9: memref<32x128xf32, #tpu.memory_space<vmem>>, %arg10: memref<32x128xf32, #tpu.memory_space<vmem>>, %arg11: memref<32x128xf32, #tpu.memory_space<vmem>>) attributes {dimension_semantics = [#tpu.dimension_semantics<parallel>, #tpu.dimension_semantics<arbitrary>], iteration_bounds = array<i64: 1, 1>, scalar_prefetch = 0 : i64, scratch_operands = 2 : i64, tpu.core_type = #tpu.core_type<tc>, window_params = [{transform_indices = @transform_0, window_bounds = array<i64: 32, 384>}, {transform_indices = @transform_1, window_bounds = array<i64: 384, 128>}, {transform_indices = @transform_2, window_bounds = array<i64: 32, 128>}, {transform_indices = @transform_3, window_bounds = array<i64: 32, 1>}, {pipeline_mode = #tpu.pipeline_mode<synchronous>, transform_indices = @transform_4, window_bounds = array<i64: 128, 128>}, {pipeline_mode = #tpu.pipeline_mode<synchronous>, transform_indices = @transform_5, window_bounds = array<i64: 128, 128>}, {pipeline_mode = #tpu.pipeline_mode<synchronous>, transform_indices = @transform_6, window_bounds = array<i64: 128, 128>}, {transform_indices = @transform_7, window_bounds = array<i64: 32, 128>}]} {
    %c0_i32 = arith.constant 0 : i32
    %0 = arith.cmpi eq, %arg1, %c0_i32 : i32
    %1 = arith.extui %0 : i1 to i32
    %c0_i32_0 = arith.constant 0 : i32
    %2 = arith.cmpi ne, %1, %c0_i32_0 : i32
    scf.if %2 {
      %cst_10 = arith.constant 0.000000e+00 : f32
      %12 = vector.broadcast %cst_10 : f32 to vector<32x128xf32>
      %c0_11 = arith.constant 0 : index
      %c0_12 = arith.constant 0 : index
      %13 = vector.load %arg10[%c0_11, %c0_12] : memref<32x128xf32, #tpu.memory_space<vmem>>, vector<32x128xf32>
      tpu.vector_store %arg10[%c0_11, %c0_12], %12 {strides = array<i32>} : memref<32x128xf32, #tpu.memory_space<vmem>>, vector<32x128xf32>,
      %c0_13 = arith.constant 0 : index
      %c0_14 = arith.constant 0 : index
      %14 = vector.load %arg4[%c0_13, %c0_14] : memref<32x128xbf16, #tpu.memory_space<vmem>>, vector<32x128xbf16>
      %c0_15 = arith.constant 0 : index
      %c0_16 = arith.constant 0 : index
      %15 = vector.load %arg6[%c0_15, %c0_16] : memref<128x128xbf16, #tpu.memory_space<vmem>>, vector<128x128xbf16>
      %cst_17 = arith.constant dense<0.000000e+00> : vector<32x128xf32>
      %16 = tpu.matmul %14, %15, %cst_17 {dimension_numbers = #tpu.dot_dimension_numbers<[1], [0], [0], [1], [0, 0, 1, 1], [], []>} : vector<32x128xbf16>, vector<128x128xbf16>, vector<32x128xf32> -> vector<32x128xf32>
      %c0_18 = arith.constant 0 : index
      %c0_19 = arith.constant 0 : index
      %17 = vector.load %arg11[%c0_18, %c0_19] : memref<32x128xf32, #tpu.memory_space<vmem>>, vector<32x128xf32>
      tpu.vector_store %arg11[%c0_18, %c0_19], %16 {strides = array<i32>} : memref<32x128xf32, #tpu.memory_space<vmem>>, vector<32x128xf32>,
    } else {
    }
    %c0 = arith.constant 0 : index
    %c0_1 = arith.constant 0 : index
    %3 = vector.load %arg10[%c0, %c0_1] : memref<32x128xf32, #tpu.memory_space<vmem>>, vector<32x128xf32>
    %c0_2 = arith.constant 0 : index
    %c0_3 = arith.constant 0 : index
    %4 = vector.load %arg2[%c0_2, %c0_3] : memref<32x384xbf16, #tpu.memory_space<vmem>>, vector<32x384xbf16>
    %c0_4 = arith.constant 0 : index
    %c0_5 = arith.constant 0 : index
    %5 = vector.load %arg3[%c0_4, %c0_5] : memref<384x128xbf16, #tpu.memory_space<vmem>>, vector<384x128xbf16>
    %cst = arith.constant dense<0.000000e+00> : vector<32x128xf32>
    %6 = tpu.matmul %4, %5, %cst {dimension_numbers = #tpu.dot_dimension_numbers<[1], [0], [0], [1], [0, 0, 1, 1], [], []>} : vector<32x384xbf16>, vector<384x128xbf16>, vector<32x128xf32> -> vector<32x128xf32>
    %7 = arith.addf %3, %6 : vector<32x128xf32>
    %c0_6 = arith.constant 0 : index
    %c0_7 = arith.constant 0 : index
    %8 = vector.load %arg10[%c0_6, %c0_7] : memref<32x128xf32, #tpu.memory_space<vmem>>, vector<32x128xf32>
    tpu.vector_store %arg10[%c0_6, %c0_7], %7 {strides = array<i32>} : memref<32x128xf32, #tpu.memory_space<vmem>>, vector<32x128xf32>,
    %c0_i32_8 = arith.constant 0 : i32
    %9 = arith.cmpi eq, %arg1, %c0_i32_8 : i32
    %10 = arith.extui %9 : i1 to i32
    %c0_i32_9 = arith.constant 0 : i32
    %11 = arith.cmpi ne, %10, %c0_i32_9 : i32
    scf.if %11 {
      %c0_10 = arith.constant 0 : index
      %c0_11 = arith.constant 0 : index
      %12 = vector.load %arg10[%c0_10, %c0_11] : memref<32x128xf32, #tpu.memory_space<vmem>>, vector<32x128xf32>
      %c0_12 = arith.constant 0 : index
      %c0_13 = arith.constant 0 : index
      %13 = vector.load %arg5[%c0_12, %c0_13] : memref<32x1xf32, #tpu.memory_space<vmem>>, vector<32x1xf32>
      %14 = vector.broadcast %13 : vector<32x1xf32> to vector<32x128xf32>
      %15 = arith.mulf %12, %14 : vector<32x128xf32>
      %16 = arith.truncf %15 : vector<32x128xf32> to vector<32x128xbf16>
      %c0_14 = arith.constant 0 : index
      %c0_15 = arith.constant 0 : index
      %17 = vector.load %arg11[%c0_14, %c0_15] : memref<32x128xf32, #tpu.memory_space<vmem>>, vector<32x128xf32>
      %c0_16 = arith.constant 0 : index
      %c0_17 = arith.constant 0 : index
      %18 = vector.load %arg7[%c0_16, %c0_17] : memref<128x128xbf16, #tpu.memory_space<vmem>>, vector<128x128xbf16>
      %cst_18 = arith.constant dense<0.000000e+00> : vector<32x128xf32>
      %19 = tpu.matmul %16, %18, %cst_18 {dimension_numbers = #tpu.dot_dimension_numbers<[1], [0], [0], [1], [0, 0, 1, 1], [], []>} : vector<32x128xbf16>, vector<128x128xbf16>, vector<32x128xf32> -> vector<32x128xf32>
      %20 = arith.addf %17, %19 : vector<32x128xf32>
      %cst_19 = arith.constant 0.000000e+00 : f32
      %21 = vector.broadcast %cst_19 : f32 to vector<32x128xf32>
      %22 = arith.maximumf %20, %21 : vector<32x128xf32>
      %23 = arith.truncf %22 : vector<32x128xf32> to vector<32x128xbf16>
      %c0_20 = arith.constant 0 : index
      %c0_21 = arith.constant 0 : index
      %24 = vector.load %arg8[%c0_20, %c0_21] : memref<128x128xbf16, #tpu.memory_space<vmem>>, vector<128x128xbf16>
      %cst_22 = arith.constant dense<0.000000e+00> : vector<32x128xf32>
      %25 = tpu.matmul %23, %24, %cst_22 {dimension_numbers = #tpu.dot_dimension_numbers<[1], [0], [0], [1], [0, 0, 1, 1], [], []>} : vector<32x128xbf16>, vector<128x128xbf16>, vector<32x128xf32> -> vector<32x128xf32>
      %c0_23 = arith.constant 0 : index
      %c0_24 = arith.constant 0 : index
      %26 = vector.load %arg9[%c0_23, %c0_24] : memref<32x128xf32, #tpu.memory_space<vmem>>, vector<32x128xf32>
      tpu.vector_store %arg9[%c0_23, %c0_24], %25 {strides = array<i32>} : memref<32x128xf32, #tpu.memory_space<vmem>>, vector<32x128xf32>,
    } else {
    }
    return
  }
  func.func @transform_0(%arg0: i32, %arg1: i32) -> (i32, i32) {
    %c0_i32 = arith.constant 0 : i32
    return %arg0, %arg1 : i32, i32
  }
  func.func @transform_1(%arg0: i32, %arg1: i32) -> (i32, i32) {
    %c0_i32 = arith.constant 0 : i32
    %c0_i32_0 = arith.constant 0 : i32
    return %arg1, %c0_i32 : i32, i32
  }
  func.func @transform_2(%arg0: i32, %arg1: i32) -> (i32, i32) {
    %c0_i32 = arith.constant 0 : i32
    %c0_i32_0 = arith.constant 0 : i32
    return %arg0, %c0_i32 : i32, i32
  }
  func.func @transform_3(%arg0: i32, %arg1: i32) -> (i32, i32) {
    %c0_i32 = arith.constant 0 : i32
    %c0_i32_0 = arith.constant 0 : i32
    return %arg0, %c0_i32 : i32, i32
  }
  func.func @transform_4(%arg0: i32, %arg1: i32) -> (i32, i32) {
    %c0_i32 = arith.constant 0 : i32
    %c0_i32_0 = arith.constant 0 : i32
    %c0_i32_1 = arith.constant 0 : i32
    return %c0_i32, %c0_i32_0 : i32, i32
  }
  func.func @transform_5(%arg0: i32, %arg1: i32) -> (i32, i32) {
    %c0_i32 = arith.constant 0 : i32
    %c0_i32_0 = arith.constant 0 : i32
    %c0_i32_1 = arith.constant 0 : i32
    return %c0_i32, %c0_i32_0 : i32, i32
  }
  func.func @transform_6(%arg0: i32, %arg1: i32) -> (i32, i32) {
    %c0_i32 = arith.constant 0 : i32
    %c0_i32_0 = arith.constant 0 : i32
    %c0_i32_1 = arith.constant 0 : i32
    return %c0_i32, %c0_i32_0 : i32, i32
  }
  func.func @transform_7(%arg0: i32, %arg1: i32) -> (i32, i32) {
    %c0_i32 = arith.constant 0 : i32
    %c0_i32_0 = arith.constant 0 : i32
    return %arg0, %c0_i32 : i32, i32
  }
}

</mosaic_0001>

<llo_original>
// kernel: tpu_custom_call.1
$region0: #{tpu_custom_call.1}
  #allocation0 [shape = 'u32[]', space=smem, size = 0x4, offset = 0x4, fixed_abs, tag = 'smem constant byte address 0x4 - core index']
  #allocation1 [shape = 'u32[144,128]{1,0:T(1,128)}', space=vmem, size = 0x12000, scoped, tag = 'internal scratch']
  #allocation2 [shape = 'f32[32,128]{1,0:T(8,128)}', space=vmem, size = 0x4000, scoped, tag = 'scratch operand']
  #allocation3 [shape = 'f32[32,128]{1,0:T(8,128)}', space=vmem, size = 0x4000, scoped, tag = 'scratch operand']
  %s0 = inlined_call_operand.hbm [shape: bf16[32,384], index: 0, kind: input, shape index: {}]
  %s1 = inlined_call_operand.hbm [shape: bf16[384,128], index: 1, kind: input, shape index: {}]
  %s2 = inlined_call_operand.vmem [shape: bf16[32,128], index: 2, kind: input, shape index: {}]
  %s3 = inlined_call_operand.vmem [shape: f32[32,1], index: 3, kind: input, shape index: {}]
  %s4 = inlined_call_operand.hbm [shape: bf16[128,128], index: 4, kind: input, shape index: {}]
  %s5 = inlined_call_operand.hbm [shape: bf16[128,128], index: 5, kind: input, shape index: {}]
  %s6 = inlined_call_operand.hbm [shape: bf16[128,128], index: 6, kind: input, shape index: {}]
  %s7 = inlined_call_operand.hbm [shape: f32[32,128], index: 7, kind: output, shape index: {}]
  %s8 = sld [smem:[#allocation0]]
  $region66: #{tpu_custom_call.1} parent=0
    _
  %s10 = ssub.s32 1, %s8
  %s11 = scalar_select 0, %s10, %s8
  $region1: #{tpu_custom_call.1} parent=0
    #allocation4 [shape = 'u8[24576]{0}', space=vmem, size = 0x6000, scoped, tag = 'input window, operand 0, single buffered']
    #allocation5 [shape = 's32[1]{0}', space=sflag, size = 0x4, scoped, tag = 'scoped memory for tpu_custom_call.1']
    #allocation6 [shape = 's32[1]{0}', space=sflag, size = 0x4, scoped, tag = 'scoped memory for tpu_custom_call.1']
    #allocation7 [shape = 'u8[98304]{0}', space=vmem, size = 0x18000, scoped, tag = 'input window, operand 1, single buffered']
    #allocation8 [shape = 's32[1]{0}', space=sflag, size = 0x4, scoped, tag = 'scoped memory for tpu_custom_call.1']
    #allocation9 [shape = 'u8[32768]{0}', space=vmem, size = 0x8000, scoped, tag = 'input window, operand 4, single buffered']
    #allocation10 [shape = 'u8[32768]{0}', space=vmem, size = 0x8000, scoped, tag = 'input window, operand 5, single buffered']
    #allocation11 [shape = 's32[1]{0}', space=sflag, size = 0x4, scoped, tag = 'scoped memory for tpu_custom_call.1']
    #allocation12 [shape = 'u8[32768]{0}', space=vmem, size = 0x8000, scoped, tag = 'input window, operand 6, single buffered']
    #allocation13 [shape = 'u8[16384]{0}', space=vmem, size = 0x4000, scoped, tag = 'output window, operand 0, single buffered']
    %12 = vsyncpa [#allocation5], 0
    %13 = vsyncpa [#allocation8], 0
    %14 = vsyncpa [#allocation11], 0
    %15 = vsyncpa [#allocation6], 0
    // Predicated region
    $region2: #{tpu_custom_call.1} parent=1 // pred_check
      _
    $region3: #{tpu_custom_call.1} parent=1 // pred_check_branch
      %17 = sbr.rel (0) target = $region5
    $region4: #{tpu_custom_call.1} parent=1 // pred_region
      %s19 = ssub.s32 768, 768
      %20 = vsyncadd [#allocation5], %s19
      %s21 = sshll.u32 [#allocation4], 4
      %s22 = int_to_ptr.vmem [resolvable:$true] %s21
      %27 = dma.hbm_to_vmem [thread:$0]  %s0, 768, %s22, [#allocation5], 192, 192, 12
    $region5: #{tpu_custom_call.1} parent=1 // pred_fallthru
      _
    // Predicated region
    $region6: #{tpu_custom_call.1} parent=1 // pred_check
      _
    $region7: #{tpu_custom_call.1} parent=1 // pred_check_branch
      %29 = sbr.rel (0) target = $region9
    $region8: #{tpu_custom_call.1} parent=1 // pred_region
      %s31 = ssub.s32 3072, 3072
      %32 = vsyncadd [#allocation8], %s31
      %s33 = sshll.u32 [#allocation7], 4
      %s34 = int_to_ptr.vmem [resolvable:$true] %s33
      %39 = dma.hbm_to_vmem [thread:$0]  %s1, 3072, %s34, [#allocation8], 64, 64, 4
    $region9: #{tpu_custom_call.1} parent=1 // pred_fallthru
      _
    // Predicated region
    $region10: #{tpu_custom_call.1} parent=1 // pred_check
      _
    $region11: #{tpu_custom_call.1} parent=1 // pred_check_branch
      %41 = sbr.rel (0) target = $region13
    $region12: #{tpu_custom_call.1} parent=1 // pred_region
      _
    $region13: #{tpu_custom_call.1} parent=1 // pred_fallthru
      _
    // Predicated region
    $region14: #{tpu_custom_call.1} parent=1 // pred_check
      _
    $region15: #{tpu_custom_call.1} parent=1 // pred_check_branch
      %43 = sbr.rel (0) target = $region17
    $region16: #{tpu_custom_call.1} parent=1 // pred_region
      _
    $region17: #{tpu_custom_call.1} parent=1 // pred_fallthru
      _
    // Predicated region
    $region18: #{tpu_custom_call.1} parent=1 // pred_check
      _
    $region19: #{tpu_custom_call.1} parent=1 // pred_check_branch
      %45 = sbr.rel (0) target = $region21
    $region20: #{tpu_custom_call.1} parent=1 // pred_region
      %s47 = ssub.s32 1024, 1024
      %48 = vsyncadd [#allocation8], %s47
      %s49 = sshll.u32 [#allocation9], 4
      %s50 = int_to_ptr.vmem [resolvable:$true] %s49
      %55 = dma.hbm_to_vmem [thread:$0]  %s4, 1024, %s50, [#allocation8], 64, 64, 4
    $region21: #{tpu_custom_call.1} parent=1 // pred_fallthru
      _
    // Predicated region
    $region22: #{tpu_custom_call.1} parent=1 // pred_check
      _
    $region23: #{tpu_custom_call.1} parent=1 // pred_check_branch
      %57 = sbr.rel (0) target = $region25
    $region24: #{tpu_custom_call.1} parent=1 // pred_region
      %s59 = ssub.s32 1024, 1024
      %60 = vsyncadd [#allocation11], %s59
      %s61 = sshll.u32 [#allocation10], 4
      %s62 = int_to_ptr.vmem [resolvable:$true] %s61
      %67 = dma.hbm_to_vmem [thread:$0]  %s5, 1024, %s62, [#allocation11], 64, 64, 4
    $region25: #{tpu_custom_call.1} parent=1 // pred_fallthru
      _
    // Predicated region
    $region26: #{tpu_custom_call.1} parent=1 // pred_check
      _
    $region27: #{tpu_custom_call.1} parent=1 // pred_check_branch
      %69 = sbr.rel (0) target = $region29
    $region28: #{tpu_custom_call.1} parent=1 // pred_region
      %s71 = ssub.s32 1024, 1024
      %72 = vsyncadd [#allocation11], %s71
      %s73 = sshll.u32 [#allocation12], 4
      %s74 = int_to_ptr.vmem [resolvable:$true] %s73
      %79 = dma.hbm_to_vmem [thread:$0]  %s6, 1024, %s74, [#allocation11], 64, 64, 4
    $region29: #{tpu_custom_call.1} parent=1 // pred_fallthru
      _
    // Predicated region
    $region30: #{tpu_custom_call.1} parent=1 // pred_check
      _
    $region31: #{tpu_custom_call.1} parent=1 // pred_check_branch
      %81 = sbr.rel (0) target = $region33
    $region32: #{tpu_custom_call.1} parent=1 // pred_region
      %82 = dma.done [#allocation5], 768
    $region33: #{tpu_custom_call.1} parent=1 // pred_fallthru
      _
    // Predicated region
    $region34: #{tpu_custom_call.1} parent=1 // pred_check
      _
    $region35: #{tpu_custom_call.1} parent=1 // pred_check_branch
      %84 = sbr.rel (0) target = $region37
    $region36: #{tpu_custom_call.1} parent=1 // pred_region
      %85 = dma.done [#allocation8], 3072
    $region37: #{tpu_custom_call.1} parent=1 // pred_fallthru
      _
    // Predicated region
    $region38: #{tpu_custom_call.1} parent=1 // pred_check
      _
    $region39: #{tpu_custom_call.1} parent=1 // pred_check_branch
      %87 = sbr.rel (0) target = $region41
    $region40: #{tpu_custom_call.1} parent=1 // pred_region
      %88 = dma.done [#allocation8], 1024
    $region41: #{tpu_custom_call.1} parent=1 // pred_fallthru
      _
    // Predicated region
    $region42: #{tpu_custom_call.1} parent=1 // pred_check
      _
    $region43: #{tpu_custom_call.1} parent=1 // pred_check_branch
      %90 = sbr.rel (0) target = $region45
    $region44: #{tpu_custom_call.1} parent=1 // pred_region
      %91 = dma.done [#allocation11], 1024
    $region45: #{tpu_custom_call.1} parent=1 // pred_fallthru
      _
    // Predicated region
    $region46: #{tpu_custom_call.1} parent=1 // pred_check
      _
    $region47: #{tpu_custom_call.1} parent=1 // pred_check_branch
      %93 = sbr.rel (0) target = $region49
    $region48: #{tpu_custom_call.1} parent=1 // pred_region
      %94 = dma.done [#allocation11], 1024
    $region49: #{tpu_custom_call.1} parent=1 // pred_fallthru
      _
    %p96 = scmp.eq.s32.totalorder 0, 0
    // Predicated region
    $region50: #{tpu_custom_call.1} parent=1 // pred_check
      %p97 = pneg %p96
    $region51: #{tpu_custom_call.1} parent=1 // pred_check_branch
      %99 = sbr.rel (%p97) target = $region53
    $region52: #{tpu_custom_call.1} parent=1 // pred_region
      %100 = vst [vmem:[#allocation2] sm:$0xff] 0.0
      %101 = vst [vmem:[#allocation2 + $0x8] sm:$0xff] 0.0
      %102 = vst [vmem:[#allocation2 + $0x10] sm:$0xff] 0.0
      %103 = vst [vmem:[#allocation2 + $0x18] sm:$0xff] 0.0
      %v104 = vld [vmem:[%s2] sm:$0xf]
      %v105 = vld [vmem:[%s2 + $0x4] sm:$0xf]
      %v106 = vld [vmem:[%s2 + $0x8] sm:$0xf]
      %v107 = vld [vmem:[%s2 + $0xc] sm:$0xf]
      %v108 = vld [vmem:[#allocation9] sm:$0xf]
      %v109 = vld [vmem:[#allocation9 + $0x4] sm:$0xf]
      %v110 = vld [vmem:[#allocation9 + $0x8] sm:$0xf]
      %v111 = vld [vmem:[#allocation9 + $0xc] sm:$0xf]
      %v112 = vld [vmem:[#allocation9 + $0x10] sm:$0xf]
      %v113 = vld [vmem:[#allocation9 + $0x14] sm:$0xf]
      %v114 = vld [vmem:[#allocation9 + $0x18] sm:$0xf]
      %v115 = vld [vmem:[#allocation9 + $0x1c] sm:$0xf]
      %v116 = vld [vmem:[#allocation9 + $0x20] sm:$0xf]
      %v117 = vld [vmem:[#allocation9 + $0x24] sm:$0xf]
      %v118 = vld [vmem:[#allocation9 + $0x28] sm:$0xf]
      %v119 = vld [vmem:[#allocation9 + $0x2c] sm:$0xf]
      %v120 = vld [vmem:[#allocation9 + $0x30] sm:$0xf]
      %v121 = vld [vmem:[#allocation9 + $0x34] sm:$0xf]
      %v122 = vld [vmem:[#allocation9 + $0x38] sm:$0xf]
      %v123 = vld [vmem:[#allocation9 + $0x3c] sm:$0xf]
      %v128 = vunpack.c.l.b16 %v104
      %v129 = vunpack.c.l.b16 %v105
      %v130 = vunpack.c.l.b16 %v106
      %v131 = vunpack.c.l.b16 %v107
      %v132 = vpack.c.b16 %v129, %v128
      %v133 = vpack.c.b16 %v131, %v130
      %v152 = vunpack.c.l.b16 %v108
      %v153 = vunpack.c.l.b16 %v109
      %v154 = vunpack.c.l.b16 %v110
      %v155 = vunpack.c.l.b16 %v111
      %v156 = vunpack.c.l.b16 %v112
      %v157 = vunpack.c.l.b16 %v113
      %v158 = vunpack.c.l.b16 %v114
      %v159 = vunpack.c.l.b16 %v115
      %v160 = vunpack.c.l.b16 %v116
      %v161 = vunpack.c.l.b16 %v117
      %v162 = vunpack.c.l.b16 %v118
      %v163 = vunpack.c.l.b16 %v119
      %v164 = vunpack.c.l.b16 %v120
      %v165 = vunpack.c.l.b16 %v121
      %v166 = vunpack.c.l.b16 %v122
      %v167 = vunpack.c.l.b16 %v123
      %v168 = vpack.c.b16 %v153, %v152
      %v169 = vpack.c.b16 %v155, %v154
      %v170 = vpack.c.b16 %v157, %v156
      %v171 = vpack.c.b16 %v159, %v158
      %v172 = vpack.c.b16 %v161, %v160
      %v173 = vpack.c.b16 %v163, %v162
      %v174 = vpack.c.b16 %v165, %v164
      %v175 = vpack.c.b16 %v167, %v166
      %184 = vmatprep.subr.bf16.mxu0 0
      %185 = vmatpush1.bf16.msra.mxu0 %v168
      %186 = vmatprep.subr.bf16.mxu0 0
      %187 = vmatpush1.bf16.msra.mxu0 %v169
      %188 = vmatprep.subr.bf16.mxu0 0
      %189 = vmatpush1.bf16.msra.mxu0 %v170
      %190 = vmatprep.subr.bf16.mxu0 0
      %191 = vmatpush1.bf16.msra.mxu0 %v171
      %192 = vmatprep.subr.bf16.mxu0 0
      %193 = vmatpush1.bf16.msra.mxu0 %v172
      %194 = vmatprep.subr.bf16.mxu0 0
      %195 = vmatpush1.bf16.msra.mxu0 %v173
      %196 = vmatprep.subr.bf16.mxu0 0
      %197 = vmatpush1.bf16.msra.mxu0 %v174
      %198 = vmatprep.subr.bf16.mxu0 0
      %199 = vmatpush1.bf16.msra.mxu0 %v175
      %200 = vmatprep.subr.bf16.mxu0 0
      %201 = vmatpush1.bf16.msra.mxu0 0
      %202 = vmatprep.subr.bf16.mxu0 0
      %203 = vmatpush1.bf16.msra.mxu0 0
      %204 = vmatprep.subr.bf16.mxu0 0
      %205 = vmatpush1.bf16.msra.mxu0 0
      %206 = vmatprep.subr.bf16.mxu0 0
      %207 = vmatpush1.bf16.msra.mxu0 0
      %208 = vmatprep.subr.bf16.mxu0 0
      %209 = vmatpush1.bf16.msra.mxu0 0
      %210 = vmatprep.subr.bf16.mxu0 0
      %211 = vmatpush1.bf16.msra.mxu0 0
      %212 = vmatprep.subr.bf16.mxu0 0
      %213 = vmatpush1.bf16.msra.mxu0 0
      %214 = vmatprep.subr.bf16.mxu0 0
      %215 = vmatpush1.bf16.msra.mxu0 0
      %216 = vmatprep.mubr.bf16.mxu0 0
      %217 = vmatmul.mubr.bf16.gmra.mrb[0].mxu0 %v132
      %v218 = vpop.f32.mrb[0].mxu0
      %v219 = vadd.f32 0.0, %v218
      %v220 = vpop.f32.mrb[0].mxu0
      %v221 = vpop.f32.mrb[0].mxu0
      %v222 = vadd.f32 0.0, %v221
      %v223 = vpop.f32.mrb[0].mxu0
      %224 = vmatprep.mubr.bf16.mxu0 0
      %225 = vmatmul.mubr.bf16.gmra.mrb[0].mxu0 %v133
      %v226 = vpop.f32.mrb[0].mxu0
      %v227 = vadd.f32 0.0, %v226
      %v228 = vpop.f32.mrb[0].mxu0
      %v229 = vpop.f32.mrb[0].mxu0
      %v230 = vadd.f32 0.0, %v229
      %v231 = vpop.f32.mrb[0].mxu0
      %232 = vdwg.mxu0
      %233 = vst [vmem:[#allocation3] sm:$0xff] %v219
      %234 = vst [vmem:[#allocation3 + $0x8] sm:$0xff] %v222
      %235 = vst [vmem:[#allocation3 + $0x10] sm:$0xff] %v227
      %236 = vst [vmem:[#allocation3 + $0x18] sm:$0xff] %v230
    $region53: #{tpu_custom_call.1} parent=1 // pred_fallthru
      _
    %v237 = vld [vmem:[#allocation2] sm:$0xff]
    %v238 = vld [vmem:[#allocation2 + $0x8] sm:$0xff]
    %v239 = vld [vmem:[#allocation2 + $0x10] sm:$0xff]
    %v240 = vld [vmem:[#allocation2 + $0x18] sm:$0xff]
    %v241 = vld [vmem:[#allocation4] sm:$0xff]
    %v242 = vld [vmem:[#allocation4 + $0x8] sm:$0xf]
    %v243 = vld [vmem:[#allocation4 + $0xc] sm:$0xff]
    %v244 = vld [vmem:[#allocation4 + $0x14] sm:$0xf]
    %v245 = vld [vmem:[#allocation4 + $0x18] sm:$0xff]
    %v246 = vld [vmem:[#allocation4 + $0x20] sm:$0xf]
    %v247 = vld [vmem:[#allocation4 + $0x24] sm:$0xff]
    %v248 = vld [vmem:[#allocation4 + $0x2c] sm:$0xf]
    %v249 = vld [vmem:[#allocation7] sm:$0xf]
    %v250 = vld [vmem:[#allocation7 + $0x4] sm:$0xf]
    %v251 = vld [vmem:[#allocation7 + $0x8] sm:$0xf]
    %v252 = vld [vmem:[#allocation7 + $0xc] sm:$0xf]
    %v253 = vld [vmem:[#allocation7 + $0x10] sm:$0xf]
    %v254 = vld [vmem:[#allocation7 + $0x14] sm:$0xf]
    %v255 = vld [vmem:[#allocation7 + $0x18] sm:$0xf]
    %v256 = vld [vmem:[#allocation7 + $0x1c] sm:$0xf]
    %v257 = vld [vmem:[#allocation7 + $0x20] sm:$0xf]
    %v258 = vld [vmem:[#allocation7 + $0x24] sm:$0xf]
    %v259 = vld [vmem:[#allocation7 + $0x28] sm:$0xf]
    %v260 = vld [vmem:[#allocation7 + $0x2c] sm:$0xf]
    %v261 = vld [vmem:[#allocation7 + $0x30] sm:$0xf]
    %v262 = vld [vmem:[#allocation7 + $0x34] sm:$0xf]
    %v263 = vld [vmem:[#allocation7 + $0x38] sm:$0xf]
    %v264 = vld [vmem:[#allocation7 + $0x3c] sm:$0xf]
    %v265 = vld [vmem:[#allocation7 + $0x40] sm:$0xf]
    %v266 = vld [vmem:[#allocation7 + $0x44] sm:$0xf]
    %v267 = vld [vmem:[#allocation7 + $0x48] sm:$0xf]
    %v268 = vld [vmem:[#allocation7 + $0x4c] sm:$0xf]
    %v269 = vld [vmem:[#allocation7 + $0x50] sm:$0xf]
    %v270 = vld [vmem:[#allocation7 + $0x54] sm:$0xf]
    %v271 = vld [vmem:[#allocation7 + $0x58] sm:$0xf]
    %v272 = vld [vmem:[#allocation7 + $0x5c] sm:$0xf]
    %v273 = vld [vmem:[#allocation7 + $0x60] sm:$0xf]
    %v274 = vld [vmem:[#allocation7 + $0x64] sm:$0xf]
    %v275 = vld [vmem:[#allocation7 + $0x68] sm:$0xf]
    %v276 = vld [vmem:[#allocation7 + $0x6c] sm:$0xf]
    %v277 = vld [vmem:[#allocation7 + $0x70] sm:$0xf]
    %v278 = vld [vmem:[#allocation7 + $0x74] sm:$0xf]
    %v279 = vld [vmem:[#allocation7 + $0x78] sm:$0xf]
    %v280 = vld [vmem:[#allocation7 + $0x7c] sm:$0xf]
    %v281 = vld [vmem:[#allocation7 + $0x80] sm:$0xf]
    %v282 = vld [vmem:[#allocation7 + $0x84] sm:$0xf]
    %v283 = vld [vmem:[#allocation7 + $0x88] sm:$0xf]
    %v284 = vld [vmem:[#allocation7 + $0x8c] sm:$0xf]
    %v285 = vld [vmem:[#allocation7 + $0x90] sm:$0xf]
    %v286 = vld [vmem:[#allocation7 + $0x94] sm:$0xf]
    %v287 = vld [vmem:[#allocation7 + $0x98] sm:$0xf]
    %v288 = vld [vmem:[#allocation7 + $0x9c] sm:$0xf]
    %v289 = vld [vmem:[#allocation7 + $0xa0] sm:$0xf]
    %v290 = vld [vmem:[#allocation7 + $0xa4] sm:$0xf]
    %v291 = vld [vmem:[#allocation7 + $0xa8] sm:$0xf]
    %v292 = vld [vmem:[#allocation7 + $0xac] sm:$0xf]
    %v293 = vld [vmem:[#allocation7 + $0xb0] sm:$0xf]
    %v294 = vld [vmem:[#allocation7 + $0xb4] sm:$0xf]
    %v295 = vld [vmem:[#allocation7 + $0xb8] sm:$0xf]
    %v296 = vld [vmem:[#allocation7 + $0xbc] sm:$0xf]
    %v305 = vunpack.c.l.b16 %v241
    %v306 = vunpack.c.h.b16 %v241
    %v307 = vunpack.c.l.b16 %v242
    %v308 = vunpack.c.l.b16 %v243
    %v309 = vunpack.c.h.b16 %v243
    %v310 = vunpack.c.l.b16 %v244
    %v311 = vunpack.c.l.b16 %v245
    %v312 = vunpack.c.h.b16 %v245
    %v313 = vunpack.c.l.b16 %v246
    %v314 = vunpack.c.l.b16 %v247
    %v315 = vunpack.c.h.b16 %v247
    %v316 = vunpack.c.l.b16 %v248
    %v317 = vpack.c.b16 %v308, %v305
    %v318 = vpack.c.b16 %v309, %v306
    %v319 = vpack.c.b16 %v310, %v307
    %v320 = vpack.c.b16 %v314, %v311
    %v321 = vpack.c.b16 %v315, %v312
    %v322 = vpack.c.b16 %v316, %v313
    %v377 = vunpack.c.l.b16 %v249
    %v378 = vunpack.c.l.b16 %v250
    %v379 = vunpack.c.l.b16 %v251
    %v380 = vunpack.c.l.b16 %v252
    %v381 = vunpack.c.l.b16 %v253
    %v382 = vunpack.c.l.b16 %v254
    %v383 = vunpack.c.l.b16 %v255
    %v384 = vunpack.c.l.b16 %v256
    %v385 = vunpack.c.l.b16 %v257
    %v386 = vunpack.c.l.b16 %v258
    %v387 = vunpack.c.l.b16 %v259
    %v388 = vunpack.c.l.b16 %v260
    %v389 = vunpack.c.l.b16 %v261
    %v390 = vunpack.c.l.b16 %v262
    %v391 = vunpack.c.l.b16 %v263
    %v392 = vunpack.c.l.b16 %v264
    %v393 = vunpack.c.l.b16 %v265
    %v394 = vunpack.c.l.b16 %v266
    %v395 = vunpack.c.l.b16 %v267
    %v396 = vunpack.c.l.b16 %v268
    %v397 = vunpack.c.l.b16 %v269
    %v398 = vunpack.c.l.b16 %v270
    %v399 = vunpack.c.l.b16 %v271
    %v400 = vunpack.c.l.b16 %v272
    %v401 = vunpack.c.l.b16 %v273
    %v402 = vunpack.c.l.b16 %v274
    %v403 = vunpack.c.l.b16 %v275
    %v404 = vunpack.c.l.b16 %v276
    %v405 = vunpack.c.l.b16 %v277
    %v406 = vunpack.c.l.b16 %v278
    %v407 = vunpack.c.l.b16 %v279
    %v408 = vunpack.c.l.b16 %v280
    %v409 = vunpack.c.l.b16 %v281
    %v410 = vunpack.c.l.b16 %v282
    %v411 = vunpack.c.l.b16 %v283
    %v412 = vunpack.c.l.b16 %v284
    %v413 = vunpack.c.l.b16 %v285
    %v414 = vunpack.c.l.b16 %v286
    %v415 = vunpack.c.l.b16 %v287
    %v416 = vunpack.c.l.b16 %v288
    %v417 = vunpack.c.l.b16 %v289
    %v418 = vunpack.c.l.b16 %v290
    %v419 = vunpack.c.l.b16 %v291
    %v420 = vunpack.c.l.b16 %v292
    %v421 = vunpack.c.l.b16 %v293
    %v422 = vunpack.c.l.b16 %v294
    %v423 = vunpack.c.l.b16 %v295
    %v424 = vunpack.c.l.b16 %v296
    %v425 = vpack.c.b16 %v378, %v377
    %v426 = vpack.c.b16 %v380, %v379
    %v427 = vpack.c.b16 %v382, %v381
    %v428 = vpack.c.b16 %v384, %v383
    %v429 = vpack.c.b16 %v386, %v385
    %v430 = vpack.c.b16 %v388, %v387
    %v431 = vpack.c.b16 %v390, %v389
    %v432 = vpack.c.b16 %v392, %v391
    %v433 = vpack.c.b16 %v394, %v393
    %v434 = vpack.c.b16 %v396, %v395
    %v435 = vpack.c.b16 %v398, %v397
    %v436 = vpack.c.b16 %v400, %v399
    %v437 = vpack.c.b16 %v402, %v401
    %v438 = vpack.c.b16 %v404, %v403
    %v439 = vpack.c.b16 %v406, %v405
    %v440 = vpack.c.b16 %v408, %v407
    %v441 = vpack.c.b16 %v410, %v409
    %v442 = vpack.c.b16 %v412, %v411
    %v443 = vpack.c.b16 %v414, %v413
    %v444 = vpack.c.b16 %v416, %v415
    %v445 = vpack.c.b16 %v418, %v417
    %v446 = vpack.c.b16 %v420, %v419
    %v447 = vpack.c.b16 %v422, %v421
    %v448 = vpack.c.b16 %v424, %v423
    %473 = vmatprep.subr.bf16.mxu0 0
    %474 = vmatpush1.bf16.msra.mxu0 %v425
    %475 = vmatprep.subr.bf16.mxu0 0
    %476 = vmatpush1.bf16.msra.mxu0 %v426
    %477 = vmatprep.subr.bf16.mxu0 0
    %478 = vmatpush1.bf16.msra.mxu0 %v427
    %479 = vmatprep.subr.bf16.mxu0 0
    %480 = vmatpush1.bf16.msra.mxu0 %v428
    %481 = vmatprep.subr.bf16.mxu0 0
    %482 = vmatpush1.bf16.msra.mxu0 %v429
    %483 = vmatprep.subr.bf16.mxu0 0
    %484 = vmatpush1.bf16.msra.mxu0 %v430
    %485 = vmatprep.subr.bf16.mxu0 0
    %486 = vmatpush1.bf16.msra.mxu0 %v431
    %487 = vmatprep.subr.bf16.mxu0 0
    %488 = vmatpush1.bf16.msra.mxu0 %v432
    %489 = vmatprep.subr.bf16.mxu0 0
    %490 = vmatpush1.bf16.msra.mxu0 %v433
    %491 = vmatprep.subr.bf16.mxu0 0
    %492 = vmatpush1.bf16.msra.mxu0 %v434
    %493 = vmatprep.subr.bf16.mxu0 0
    %494 = vmatpush1.bf16.msra.mxu0 %v435
    %495 = vmatprep.subr.bf16.mxu0 0
    %496 = vmatpush1.bf16.msra.mxu0 %v436
    %497 = vmatprep.subr.bf16.mxu0 0
    %498 = vmatpush1.bf16.msra.mxu0 %v437
    %499 = vmatprep.subr.bf16.mxu0 0
    %500 = vmatpush1.bf16.msra.mxu0 %v438
    %501 = vmatprep.subr.bf16.mxu0 0
    %502 = vmatpush1.bf16.msra.mxu0 %v439
    %503 = vmatprep.subr.bf16.mxu0 0
    %504 = vmatpush1.bf16.msra.mxu0 %v440
    %505 = vmatprep.mubr.bf16.mxu0 %v318
    %506 = vmatmul.mubr.bf16.gmra.mrb[0].mxu0 %v317
    %v507 = vpop.f32.mrb[0].mxu0
    %v508 = vadd.f32 0.0, %v507
    %v509 = vpop.f32.mrb[0].mxu0
    %v510 = vpop.f32.mrb[0].mxu0
    %v511 = vadd.f32 0.0, %v510
    %v512 = vpop.f32.mrb[0].mxu0
    %513 = vmatprep.mubr.bf16.mxu0 %v321
    %514 = vmatmul.mubr.bf16.gmra.mrb[0].mxu0 %v320
    %v515 = vpop.f32.mrb[0].mxu0
    %v516 = vadd.f32 0.0, %v515
    %v517 = vpop.f32.mrb[0].mxu0
    %v518 = vpop.f32.mrb[0].mxu0
    %v519 = vadd.f32 0.0, %v518
    %v520 = vpop.f32.mrb[0].mxu0
    %521 = vdwg.mxu0
    %522 = vmatprep.subr.bf16.mxu0 0
    %523 = vmatpush1.bf16.msra.mxu0 %v441
    %524 = vmatprep.subr.bf16.mxu0 0
    %525 = vmatpush1.bf16.msra.mxu0 %v442
    %526 = vmatprep.subr.bf16.mxu0 0
    %527 = vmatpush1.bf16.msra.mxu0 %v443
    %528 = vmatprep.subr.bf16.mxu0 0
    %529 = vmatpush1.bf16.msra.mxu0 %v444
    %530 = vmatprep.subr.bf16.mxu0 0
    %531 = vmatpush1.bf16.msra.mxu0 %v445
    %532 = vmatprep.subr.bf16.mxu0 0
    %533 = vmatpush1.bf16.msra.mxu0 %v446
    %534 = vmatprep.subr.bf16.mxu0 0
    %535 = vmatpush1.bf16.msra.mxu0 %v447
    %536 = vmatprep.subr.bf16.mxu0 0
    %537 = vmatpush1.bf16.msra.mxu0 %v448
    %538 = vmatprep.subr.bf16.mxu0 0
    %539 = vmatpush1.bf16.msra.mxu0 0
    %540 = vmatprep.subr.bf16.mxu0 0
    %541 = vmatpush1.bf16.msra.mxu0 0
    %542 = vmatprep.subr.bf16.mxu0 0
    %543 = vmatpush1.bf16.msra.mxu0 0
    %544 = vmatprep.subr.bf16.mxu0 0
    %545 = vmatpush1.bf16.msra.mxu0 0
    %546 = vmatprep.subr.bf16.mxu0 0
    %547 = vmatpush1.bf16.msra.mxu0 0
    %548 = vmatprep.subr.bf16.mxu0 0
    %549 = vmatpush1.bf16.msra.mxu0 0
    %550 = vmatprep.subr.bf16.mxu0 0
    %551 = vmatpush1.bf16.msra.mxu0 0
    %552 = vmatprep.subr.bf16.mxu0 0
    %553 = vmatpush1.bf16.msra.mxu0 0
    %554 = vmatprep.mubr.bf16.mxu0 0
    %555 = vmatmul.mubr.bf16.gmra.mrb[0].mxu0 %v319
    %v556 = vpop.f32.mrb[0].mxu0
    %v557 = vadd.f32 %v508, %v556
    %v558 = vpop.f32.mrb[0].mxu0
    %v559 = vpop.f32.mrb[0].mxu0
    %v560 = vadd.f32 %v511, %v559
    %v561 = vpop.f32.mrb[0].mxu0
    %562 = vmatprep.mubr.bf16.mxu0 0
    %563 = vmatmul.mubr.bf16.gmra.mrb[0].mxu0 %v322
    %v564 = vpop.f32.mrb[0].mxu0
    %v565 = vadd.f32 %v516, %v564
    %v566 = vpop.f32.mrb[0].mxu0
    %v567 = vpop.f32.mrb[0].mxu0
    %v568 = vadd.f32 %v519, %v567
    %v569 = vpop.f32.mrb[0].mxu0
    %570 = vdwg.mxu0
    %v571 = vadd.f32 %v237, %v557
    %v572 = vadd.f32 %v238, %v560
    %v573 = vadd.f32 %v239, %v565
    %v574 = vadd.f32 %v240, %v568
    %575 = vst [vmem:[#allocation2] sm:$0xff] %v571
    %576 = vst [vmem:[#allocation2 + $0x8] sm:$0xff] %v572
    %577 = vst [vmem:[#allocation2 + $0x10] sm:$0xff] %v573
    %578 = vst [vmem:[#allocation2 + $0x18] sm:$0xff] %v574
    // Predicated region
    $region54: #{tpu_custom_call.1} parent=1 // pred_check
      %p579 = pneg %p96
    $region55: #{tpu_custom_call.1} parent=1 // pred_check_branch
      %581 = sbr.rel (%p579) target = $region57
    $region56: #{tpu_custom_call.1} parent=1 // pred_region
      %v582 = vld [vmem:[#allocation2] sm:$0xff]
      %v583 = vld [vmem:[#allocation2 + $0x8] sm:$0xff]
      %v584 = vld [vmem:[#allocation2 + $0x10] sm:$0xff]
      %v585 = vld [vmem:[#allocation2 + $0x18] sm:$0xff]
      %v586 = vld [vmem:[%s3] sm:$0xff]
      %v587 = vld [vmem:[%s3 + $0x8] sm:$0xff]
      %v588 = vld [vmem:[%s3 + $0x10] sm:$0xff]
      %v589 = vld [vmem:[%s3 + $0x18] sm:$0xff]
      %591 = vset.pattern.permute.xlu0 0
      %592 = vperm.xlu0 %591, %v586
      %v593 = vpop.permute.xlu0 %592
      %596 = vset.pattern.permute.xlu0 0
      %597 = vperm.xlu0 %596, %v587
      %v598 = vpop.permute.xlu0 %597
      %601 = vset.pattern.permute.xlu0 0
      %602 = vperm.xlu0 %601, %v588
      %v603 = vpop.permute.xlu0 %602
      %606 = vset.pattern.permute.xlu0 0
      %607 = vperm.xlu0 %606, %v589
      %v608 = vpop.permute.xlu0 %607
      %v610 = vmul.f32 %v582, %v593
      %v611 = vmul.f32 %v583, %v598
      %v612 = vmul.f32 %v584, %v603
      %v613 = vmul.f32 %v585, %v608
      %v614 = vpack.c.bf16 %v611, %v610
      %v615 = vpack.c.bf16 %v613, %v612
      %v616 = vld [vmem:[#allocation3] sm:$0xff]
      %v617 = vld [vmem:[#allocation3 + $0x8] sm:$0xff]
      %v618 = vld [vmem:[#allocation3 + $0x10] sm:$0xff]
      %v619 = vld [vmem:[#allocation3 + $0x18] sm:$0xff]
      %v620 = vld [vmem:[#allocation10] sm:$0xf]
      %v621 = vld [vmem:[#allocation10 + $0x4] sm:$0xf]
      %v622 = vld [vmem:[#allocation10 + $0x8] sm:$0xf]
      %v623 = vld [vmem:[#allocation10 + $0xc] sm:$0xf]
      %v624 = vld [vmem:[#allocation10 + $0x10] sm:$0xf]
      %v625 = vld [vmem:[#allocation10 + $0x14] sm:$0xf]
      %v626 = vld [vmem:[#allocation10 + $0x18] sm:$0xf]
      %v627 = vld [vmem:[#allocation10 + $0x1c] sm:$0xf]
      %v628 = vld [vmem:[#allocation10 + $0x20] sm:$0xf]
      %v629 = vld [vmem:[#allocation10 + $0x24] sm:$0xf]
      %v630 = vld [vmem:[#allocation10 + $0x28] sm:$0xf]
      %v631 = vld [vmem:[#allocation10 + $0x2c] sm:$0xf]
      %v632 = vld [vmem:[#allocation10 + $0x30] sm:$0xf]
      %v633 = vld [vmem:[#allocation10 + $0x34] sm:$0xf]
      %v634 = vld [vmem:[#allocation10 + $0x38] sm:$0xf]
      %v635 = vld [vmem:[#allocation10 + $0x3c] sm:$0xf]
      %v652 = vunpack.c.l.b16 %v620
      %v653 = vunpack.c.l.b16 %v621
      %v654 = vunpack.c.l.b16 %v622
      %v655 = vunpack.c.l.b16 %v623
      %v656 = vunpack.c.l.b16 %v624
      %v657 = vunpack.c.l.b16 %v625
      %v658 = vunpack.c.l.b16 %v626
      %v659 = vunpack.c.l.b16 %v627
      %v660 = vunpack.c.l.b16 %v628
      %v661 = vunpack.c.l.b16 %v629
      %v662 = vunpack.c.l.b16 %v630
      %v663 = vunpack.c.l.b16 %v631
      %v664 = vunpack.c.l.b16 %v632
      %v665 = vunpack.c.l.b16 %v633
      %v666 = vunpack.c.l.b16 %v634
      %v667 = vunpack.c.l.b16 %v635
      %v668 = vpack.c.b16 %v653, %v652
      %v669 = vpack.c.b16 %v655, %v654
      %v670 = vpack.c.b16 %v657, %v656
      %v671 = vpack.c.b16 %v659, %v658
      %v672 = vpack.c.b16 %v661, %v660
      %v673 = vpack.c.b16 %v663, %v662
      %v674 = vpack.c.b16 %v665, %v664
      %v675 = vpack.c.b16 %v667, %v666
      %684 = vmatprep.subr.bf16.mxu0 0
      %685 = vmatpush1.bf16.msra.mxu0 %v668
      %686 = vmatprep.subr.bf16.mxu0 0
      %687 = vmatpush1.bf16.msra.mxu0 %v669
      %688 = vmatprep.subr.bf16.mxu0 0
      %689 = vmatpush1.bf16.msra.mxu0 %v670
      %690 = vmatprep.subr.bf16.mxu0 0
      %691 = vmatpush1.bf16.msra.mxu0 %v671
      %692 = vmatprep.subr.bf16.mxu0 0
      %693 = vmatpush1.bf16.msra.mxu0 %v672
      %694 = vmatprep.subr.bf16.mxu0 0
      %695 = vmatpush1.bf16.msra.mxu0 %v673
      %696 = vmatprep.subr.bf16.mxu0 0
      %697 = vmatpush1.bf16.msra.mxu0 %v674
      %698 = vmatprep.subr.bf16.mxu0 0
      %699 = vmatpush1.bf16.msra.mxu0 %v675
      %700 = vmatprep.subr.bf16.mxu0 0
      %701 = vmatpush1.bf16.msra.mxu0 0
      %702 = vmatprep.subr.bf16.mxu0 0
      %703 = vmatpush1.bf16.msra.mxu0 0
      %704 = vmatprep.subr.bf16.mxu0 0
      %705 = vmatpush1.bf16.msra.mxu0 0
      %706 = vmatprep.subr.bf16.mxu0 0
      %707 = vmatpush1.bf16.msra.mxu0 0
      %708 = vmatprep.subr.bf16.mxu0 0
      %709 = vmatpush1.bf16.msra.mxu0 0
      %710 = vmatprep.subr.bf16.mxu0 0
      %711 = vmatpush1.bf16.msra.mxu0 0
      %712 = vmatprep.subr.bf16.mxu0 0
      %713 = vmatpush1.bf16.msra.mxu0 0
      %714 = vmatprep.subr.bf16.mxu0 0
      %715 = vmatpush1.bf16.msra.mxu0 0
      %716 = vmatprep.mubr.bf16.mxu0 0
      %717 = vmatmul.mubr.bf16.gmra.mrb[0].mxu0 %v614
      %v718 = vpop.f32.mrb[0].mxu0
      %v719 = vadd.f32 0.0, %v718
      %v720 = vpop.f32.mrb[0].mxu0
      %v721 = vpop.f32.mrb[0].mxu0
      %v722 = vadd.f32 0.0, %v721
      %v723 = vpop.f32.mrb[0].mxu0
      %724 = vmatprep.mubr.bf16.mxu0 0
      %725 = vmatmul.mubr.bf16.gmra.mrb[0].mxu0 %v615
      %v726 = vpop.f32.mrb[0].mxu0
      %v727 = vadd.f32 0.0, %v726
      %v728 = vpop.f32.mrb[0].mxu0
      %v729 = vpop.f32.mrb[0].mxu0
      %v730 = vadd.f32 0.0, %v729
      %v731 = vpop.f32.mrb[0].mxu0
      %732 = vdwg.mxu0
      %v733 = vadd.f32 %v616, %v719
      %v734 = vadd.f32 %v617, %v722
      %v735 = vadd.f32 %v618, %v727
      %v736 = vadd.f32 %v619, %v730
      %v737 = vmax.f32 %v733, 0.0
      %v738 = vmax.f32 %v734, 0.0
      %v739 = vmax.f32 %v735, 0.0
      %v740 = vmax.f32 %v736, 0.0
      %v741 = vpack.c.bf16 %v738, %v737
      %v742 = vpack.c.bf16 %v740, %v739
      %v743 = vld [vmem:[#allocation12] sm:$0xf]
      %v744 = vld [vmem:[#allocation12 + $0x4] sm:$0xf]
      %v745 = vld [vmem:[#allocation12 + $0x8] sm:$0xf]
      %v746 = vld [vmem:[#allocation12 + $0xc] sm:$0xf]
      %v747 = vld [vmem:[#allocation12 + $0x10] sm:$0xf]
      %v748 = vld [vmem:[#allocation12 + $0x14] sm:$0xf]
      %v749 = vld [vmem:[#allocation12 + $0x18] sm:$0xf]
      %v750 = vld [vmem:[#allocation12 + $0x1c] sm:$0xf]
      %v751 = vld [vmem:[#allocation12 + $0x20] sm:$0xf]
      %v752 = vld [vmem:[#allocation12 + $0x24] sm:$0xf]
      %v753 = vld [vmem:[#allocation12 + $0x28] sm:$0xf]
      %v754 = vld [vmem:[#allocation12 + $0x2c] sm:$0xf]
      %v755 = vld [vmem:[#allocation12 + $0x30] sm:$0xf]
      %v756 = vld [vmem:[#allocation12 + $0x34] sm:$0xf]
      %v757 = vld [vmem:[#allocation12 + $0x38] sm:$0xf]
      %v758 = vld [vmem:[#allocation12 + $0x3c] sm:$0xf]
      %v775 = vunpack.c.l.b16 %v743
      %v776 = vunpack.c.l.b16 %v744
      %v777 = vunpack.c.l.b16 %v745
      %v778 = vunpack.c.l.b16 %v746
      %v779 = vunpack.c.l.b16 %v747
      %v780 = vunpack.c.l.b16 %v748
      %v781 = vunpack.c.l.b16 %v749
      %v782 = vunpack.c.l.b16 %v750
      %v783 = vunpack.c.l.b16 %v751
      %v784 = vunpack.c.l.b16 %v752
      %v785 = vunpack.c.l.b16 %v753
      %v786 = vunpack.c.l.b16 %v754
      %v787 = vunpack.c.l.b16 %v755
      %v788 = vunpack.c.l.b16 %v756
      %v789 = vunpack.c.l.b16 %v757
      %v790 = vunpack.c.l.b16 %v758
      %v791 = vpack.c.b16 %v776, %v775
      %v792 = vpack.c.b16 %v778, %v777
      %v793 = vpack.c.b16 %v780, %v779
      %v794 = vpack.c.b16 %v782, %v781
      %v795 = vpack.c.b16 %v784, %v783
      %v796 = vpack.c.b16 %v786, %v785
      %v797 = vpack.c.b16 %v788, %v787
      %v798 = vpack.c.b16 %v790, %v789
      %807 = vmatprep.subr.bf16.mxu0 0
      %808 = vmatpush1.bf16.msra.mxu0 %v791
      %809 = vmatprep.subr.bf16.mxu0 0
      %810 = vmatpush1.bf16.msra.mxu0 %v792
      %811 = vmatprep.subr.bf16.mxu0 0
      %812 = vmatpush1.bf16.msra.mxu0 %v793
      %813 = vmatprep.subr.bf16.mxu0 0
      %814 = vmatpush1.bf16.msra.mxu0 %v794
      %815 = vmatprep.subr.bf16.mxu0 0
      %816 = vmatpush1.bf16.msra.mxu0 %v795
      %817 = vmatprep.subr.bf16.mxu0 0
      %818 = vmatpush1.bf16.msra.mxu0 %v796
      %819 = vmatprep.subr.bf16.mxu0 0
      %820 = vmatpush1.bf16.msra.mxu0 %v797
      %821 = vmatprep.subr.bf16.mxu0 0
      %822 = vmatpush1.bf16.msra.mxu0 %v798
      %823 = vmatprep.subr.bf16.mxu0 0
      %824 = vmatpush1.bf16.msra.mxu0 0
      %825 = vmatprep.subr.bf16.mxu0 0
      %826 = vmatpush1.bf16.msra.mxu0 0
      %827 = vmatprep.subr.bf16.mxu0 0
      %828 = vmatpush1.bf16.msra.mxu0 0
      %829 = vmatprep.subr.bf16.mxu0 0
      %830 = vmatpush1.bf16.msra.mxu0 0
      %831 = vmatprep.subr.bf16.mxu0 0
      %832 = vmatpush1.bf16.msra.mxu0 0
      %833 = vmatprep.subr.bf16.mxu0 0
      %834 = vmatpush1.bf16.msra.mxu0 0
      %835 = vmatprep.subr.bf16.mxu0 0
      %836 = vmatpush1.bf16.msra.mxu0 0
      %837 = vmatprep.subr.bf16.mxu0 0
      %838 = vmatpush1.bf16.msra.mxu0 0
      %839 = vmatprep.mubr.bf16.mxu0 0
      %840 = vmatmul.mubr.bf16.gmra.mrb[0].mxu0 %v741
      %v841 = vpop.f32.mrb[0].mxu0
      %v842 = vadd.f32 0.0, %v841
      %v843 = vpop.f32.mrb[0].mxu0
      %v844 = vpop.f32.mrb[0].mxu0
      %v845 = vadd.f32 0.0, %v844
      %v846 = vpop.f32.mrb[0].mxu0
      %847 = vmatprep.mubr.bf16.mxu0 0
      %848 = vmatmul.mubr.bf16.gmra.mrb[0].mxu0 %v742
      %v849 = vpop.f32.mrb[0].mxu0
      %v850 = vadd.f32 0.0, %v849
      %v851 = vpop.f32.mrb[0].mxu0
      %v852 = vpop.f32.mrb[0].mxu0
      %v853 = vadd.f32 0.0, %v852
      %v854 = vpop.f32.mrb[0].mxu0
      %855 = vdwg.mxu0
      %856 = vst [vmem:[#allocation13] sm:$0xff] %v842
      %857 = vst [vmem:[#allocation13 + $0x8] sm:$0xff] %v845
      %858 = vst [vmem:[#allocation13 + $0x10] sm:$0xff] %v850
      %859 = vst [vmem:[#allocation13 + $0x18] sm:$0xff] %v853
    $region57: #{tpu_custom_call.1} parent=1 // pred_fallthru
      _
    // Predicated region
    $region58: #{tpu_custom_call.1} parent=1 // pred_check
      _
    $region59: #{tpu_custom_call.1} parent=1 // pred_check_branch
      %861 = sbr.rel (0) target = $region61
    $region60: #{tpu_custom_call.1} parent=1 // pred_region
      %s863 = ssub.s32 512, 512
      %864 = vsyncadd [#allocation6], %s863
      %s865 = sshll.u32 [#allocation13], 4
      %s866 = int_to_ptr.vmem [resolvable:$true] %s865
      %871 = dma.vmem_to_hbm [thread:$0]  %s866, 512, %s7, [#allocation6], 128, 128, 8
    $region61: #{tpu_custom_call.1} parent=1 // pred_fallthru
      _
    // Predicated region
    $region62: #{tpu_custom_call.1} parent=1 // pred_check
      _
    $region63: #{tpu_custom_call.1} parent=1 // pred_check_branch
      %873 = sbr.rel (0) target = $region65
    $region64: #{tpu_custom_call.1} parent=1 // pred_region
      %874 = dma.done [#allocation6], 512
    $region65: #{tpu_custom_call.1} parent=1 // pred_fallthru
      _
    %875 = vsyncpa [#allocation5], 1
    %876 = vsyncpa [#allocation8], 1
    %877 = vsyncpa [#allocation11], 1
    %878 = vsyncpa [#allocation6], 1

// kernel: tpu_custom_call.1
$region0: #{tpu_custom_call.1}
  #allocation0 [shape = 'u32[]', space=smem, size = 0x4, offset = 0x4, fixed_abs, tag = 'smem constant byte address 0x4 - core index']
  #allocation1 [shape = 'u32[144,128]{1,0:T(1,128)}', space=vmem, size = 0x12000, scoped, tag = 'internal scratch']
  #allocation2 [shape = 'f32[32,128]{1,0:T(8,128)}', space=vmem, size = 0x4000, scoped, tag = 'scratch operand']
  #allocation3 [shape = 'f32[32,128]{1,0:T(8,128)}', space=vmem, size = 0x4000, scoped, tag = 'scratch operand']
  %s0 = inlined_call_operand.hbm [shape: bf16[32,384], index: 0, kind: input, shape index: {}]
  %s1 = inlined_call_operand.hbm [shape: bf16[384,128], index: 1, kind: input, shape index: {}]
  %s2 = inlined_call_operand.vmem [shape: bf16[32,128], index: 2, kind: input, shape index: {}]
  %s3 = inlined_call_operand.vmem [shape: f32[32,1], index: 3, kind: input, shape index: {}]
  %s4 = inlined_call_operand.hbm [shape: bf16[128,128], index: 4, kind: input, shape index: {}]
  %s5 = inlined_call_operand.hbm [shape: bf16[128,128], index: 5, kind: input, shape index: {}]
  %s6 = inlined_call_operand.hbm [shape: bf16[128,128], index: 6, kind: input, shape index: {}]
  %s7 = inlined_call_operand.hbm [shape: f32[32,128], index: 7, kind: output, shape index: {}]
  %s8 = sld [smem:[#allocation0]]
  $region66: #{tpu_custom_call.1} parent=0
    _
  %s10 = ssub.s32 1, %s8
  %s11 = scalar_select 0, %s10, %s8
  $region1: #{tpu_custom_call.1} parent=0
    #allocation4 [shape = 'u8[24576]{0}', space=vmem, size = 0x6000, scoped, tag = 'input window, operand 0, single buffered']
    #allocation5 [shape = 's32[1]{0}', space=sflag, size = 0x4, scoped, tag = 'scoped memory for tpu_custom_call.1']
    #allocation6 [shape = 's32[1]{0}', space=sflag, size = 0x4, scoped, tag = 'scoped memory for tpu_custom_call.1']
    #allocation7 [shape = 'u8[98304]{0}', space=vmem, size = 0x18000, scoped, tag = 'input window, operand 1, single buffered']
    #allocation8 [shape = 's32[1]{0}', space=sflag, size = 0x4, scoped, tag = 'scoped memory for tpu_custom_call.1']
    #allocation9 [shape = 'u8[32768]{0}', space=vmem, size = 0x8000, scoped, tag = 'input window, operand 4, single buffered']
    #allocation10 [shape = 'u8[32768]{0}', space=vmem, size = 0x8000, scoped, tag = 'input window, operand 5, single buffered']
    #allocation11 [shape = 's32[1]{0}', space=sflag, size = 0x4, scoped, tag = 'scoped memory for tpu_custom_call.1']
    #allocation12 [shape = 'u8[32768]{0}', space=vmem, size = 0x8000, scoped, tag = 'input window, operand 6, single buffered']
    #allocation13 [shape = 'u8[16384]{0}', space=vmem, size = 0x4000, scoped, tag = 'output window, operand 0, single buffered']
    %12 = vsyncpa [#allocation5], 0
    %13 = vsyncpa [#allocation8], 0
    %14 = vsyncpa [#allocation11], 0
    %15 = vsyncpa [#allocation6], 0
    // Predicated region
    $region2: #{tpu_custom_call.1} parent=1 // pred_check
      _
    $region3: #{tpu_custom_call.1} parent=1 // pred_check_branch
      %17 = sbr.rel (0) target = $region5
    $region4: #{tpu_custom_call.1} parent=1 // pred_region
      %s19 = ssub.s32 768, 768
      %20 = vsyncadd [#allocation5], %s19
      %s21 = sshll.u32 [#allocation4], 4
      %s22 = int_to_ptr.vmem [resolvable:$true] %s21
      %27 = dma.hbm_to_vmem [thread:$0]  %s0, 768, %s22, [#allocation5], 192, 192, 12
    $region5: #{tpu_custom_call.1} parent=1 // pred_fallthru
      _
    // Predicated region
    $region6: #{tpu_custom_call.1} parent=1 // pred_check
      _
    $region7: #{tpu_custom_call.1} parent=1 // pred_check_branch
      %29 = sbr.rel (0) target = $region9
    $region8: #{tpu_custom_call.1} parent=1 // pred_region
      %s31 = ssub.s32 3072, 3072
      %32 = vsyncadd [#allocation8], %s31
      %s33 = sshll.u32 [#allocation7], 4
      %s34 = int_to_ptr.vmem [resolvable:$true] %s33
      %39 = dma.hbm_to_vmem [thread:$0]  %s1, 3072, %s34, [#allocation8], 64, 64, 4
    $region9: #{tpu_custom_call.1} parent=1 // pred_fallthru
      _
    // Predicated region
    $region10: #{tpu_custom_call.1} parent=1 // pred_check
      _
    $region11: #{tpu_custom_call.1} parent=1 // pred_check_branch
      %41 = sbr.rel (0) target = $region13
    $region12: #{tpu_custom_call.1} parent=1 // pred_region
      _
    $region13: #{tpu_custom_call.1} parent=1 // pred_fallthru
      _
    // Predicated region
    $region14: #{tpu_custom_call.1} parent=1 // pred_check
      _
    $region15: #{tpu_custom_call.1} parent=1 // pred_check_branch
      %43 = sbr.rel (0) target = $region17
    $region16: #{tpu_custom_call.1} parent=1 // pred_region
      _
    $region17: #{tpu_custom_call.1} parent=1 // pred_fallthru
      _
    // Predicated region
    $region18: #{tpu_custom_call.1} parent=1 // pred_check
      _
    $region19: #{tpu_custom_call.1} parent=1 // pred_check_branch
      %45 = sbr.rel (0) target = $region21
    $region20: #{tpu_custom_call.1} parent=1 // pred_region
      %s47 = ssub.s32 1024, 1024
      %48 = vsyncadd [#allocation8], %s47
      %s49 = sshll.u32 [#allocation9], 4
      %s50 = int_to_ptr.vmem [resolvable:$true] %s49
      %55 = dma.hbm_to_vmem [thread:$0]  %s4, 1024, %s50, [#allocation8], 64, 64, 4
    $region21: #{tpu_custom_call.1} parent=1 // pred_fallthru
      _
    // Predicated region
    $region22: #{tpu_custom_call.1} parent=1 // pred_check
      _
    $region23: #{tpu_custom_call.1} parent=1 // pred_check_branch
      %57 = sbr.rel (0) target = $region25
    $region24: #{tpu_custom_call.1} parent=1 // pred_region
      %s59 = ssub.s32 1024, 1024
      %60 = vsyncadd [#allocation11], %s59
      %s61 = sshll.u32 [#allocation10], 4
      %s62 = int_to_ptr.vmem [resolvable:$true] %s61
      %67 = dma.hbm_to_vmem [thread:$0]  %s5, 1024, %s62, [#allocation11], 64, 64, 4
    $region25: #{tpu_custom_call.1} parent=1 // pred_fallthru
      _
    // Predicated region
    $region26: #{tpu_custom_call.1} parent=1 // pred_check
      _
    $region27: #{tpu_custom_call.1} parent=1 // pred_check_branch
      %69 = sbr.rel (0) target = $region29
    $region28: #{tpu_custom_call.1} parent=1 // pred_region
      %s71 = ssub.s32 1024, 1024
      %72 = vsyncadd [#allocation11], %s71
      %s73 = sshll.u32 [#allocation12], 4
      %s74 = int_to_ptr.vmem [resolvable:$true] %s73
      %79 = dma.hbm_to_vmem [thread:$0]  %s6, 1024, %s74, [#allocation11], 64, 64, 4
    $region29: #{tpu_custom_call.1} parent=1 // pred_fallthru
      _
    // Predicated region
    $region30: #{tpu_custom_call.1} parent=1 // pred_check
      _
    $region31: #{tpu_custom_call.1} parent=1 // pred_check_branch
      %81 = sbr.rel (0) target = $region33
    $region32: #{tpu_custom_call.1} parent=1 // pred_region
      %82 = dma.done [#allocation5], 768
    $region33: #{tpu_custom_call.1} parent=1 // pred_fallthru
      _
    // Predicated region
    $region34: #{tpu_custom_call.1} parent=1 // pred_check
      _
    $region35: #{tpu_custom_call.1} parent=1 // pred_check_branch
      %84 = sbr.rel (0) target = $region37
    $region36: #{tpu_custom_call.1} parent=1 // pred_region
      %85 = dma.done [#allocation8], 3072
    $region37: #{tpu_custom_call.1} parent=1 // pred_fallthru
      _
    // Predicated region
    $region38: #{tpu_custom_call.1} parent=1 // pred_check
      _
    $region39: #{tpu_custom_call.1} parent=1 // pred_check_branch
      %87 = sbr.rel (0) target = $region41
    $region40: #{tpu_custom_call.1} parent=1 // pred_region
      %88 = dma.done [#allocation8], 1024
    $region41: #{tpu_custom_call.1} parent=1 // pred_fallthru
      _
    // Predicated region
    $region42: #{tpu_custom_call.1} parent=1 // pred_check
      _
    $region43: #{tpu_custom_call.1} parent=1 // pred_check_branch
      %90 = sbr.rel (0) target = $region45
    $region44: #{tpu_custom_call.1} parent=1 // pred_region
      %91 = dma.done [#allocation11], 1024
    $region45: #{tpu_custom_call.1} parent=1 // pred_fallthru
      _
    // Predicated region
    $region46: #{tpu_custom_call.1} parent=1 // pred_check
      _
    $region47: #{tpu_custom_call.1} parent=1 // pred_check_branch
      %93 = sbr.rel (0) target = $region49
    $region48: #{tpu_custom_call.1} parent=1 // pred_region
      %94 = dma.done [#allocation11], 1024
    $region49: #{tpu_custom_call.1} parent=1 // pred_fallthru
      _
    %p96 = scmp.eq.s32.totalorder 0, 0
    // Predicated region
    $region50: #{tpu_custom_call.1} parent=1 // pred_check
      %p97 = pneg %p96
    $region51: #{tpu_custom_call.1} parent=1 // pred_check_branch
      %99 = sbr.rel (%p97) target = $region53
    $region52: #{tpu_custom_call.1} parent=1 // pred_region
      %100 = vst [vmem:[#allocation2] sm:$0xff] 0.0
      %101 = vst [vmem:[#allocation2 + $0x8] sm:$0xff] 0.0
      %102 = vst [vmem:[#allocation2 + $0x10] sm:$0xff] 0.0
      %103 = vst [vmem:[#allocation2 + $0x18] sm:$0xff] 0.0
      %v104 = vld [vmem:[%s2] sm:$0xf]
      %v105 = vld [vmem:[%s2 + $0x4] sm:$0xf]
      %v106 = vld [vmem:[%s2 + $0x8] sm:$0xf]
      %v107 = vld [vmem:[%s2 + $0xc] sm:$0xf]
      %v108 = vld [vmem:[#allocation9] sm:$0xf]
      %v109 = vld [vmem:[#allocation9 + $0x4] sm:$0xf]
      %v110 = vld [vmem:[#allocation9 + $0x8] sm:$0xf]
      %v111 = vld [vmem:[#allocation9 + $0xc] sm:$0xf]
      %v112 = vld [vmem:[#allocation9 + $0x10] sm:$0xf]
      %v113 = vld [vmem:[#allocation9 + $0x14] sm:$0xf]
      %v114 = vld [vmem:[#allocation9 + $0x18] sm:$0xf]
      %v115 = vld [vmem:[#allocation9 + $0x1c] sm:$0xf]
      %v116 = vld [vmem:[#allocation9 + $0x20] sm:$0xf]
      %v117 = vld [vmem:[#allocation9 + $0x24] sm:$0xf]
      %v118 = vld [vmem:[#allocation9 + $0x28] sm:$0xf]
      %v119 = vld [vmem:[#allocation9 + $0x2c] sm:$0xf]
      %v120 = vld [vmem:[#allocation9 + $0x30] sm:$0xf]
      %v121 = vld [vmem:[#allocation9 + $0x34] sm:$0xf]
      %v122 = vld [vmem:[#allocation9 + $0x38] sm:$0xf]
      %v123 = vld [vmem:[#allocation9 + $0x3c] sm:$0xf]
      %v128 = vunpack.c.l.b16 %v104
      %v129 = vunpack.c.l.b16 %v105
      %v130 = vunpack.c.l.b16 %v106
      %v131 = vunpack.c.l.b16 %v107
      %v132 = vpack.c.b16 %v129, %v128
      %v133 = vpack.c.b16 %v131, %v130
      %v152 = vunpack.c.l.b16 %v108
      %v153 = vunpack.c.l.b16 %v109
      %v154 = vunpack.c.l.b16 %v110
      %v155 = vunpack.c.l.b16 %v111
      %v156 = vunpack.c.l.b16 %v112
      %v157 = vunpack.c.l.b16 %v113
      %v158 = vunpack.c.l.b16 %v114
      %v159 = vunpack.c.l.b16 %v115
      %v160 = vunpack.c.l.b16 %v116
      %v161 = vunpack.c.l.b16 %v117
      %v162 = vunpack.c.l.b16 %v118
      %v163 = vunpack.c.l.b16 %v119
      %v164 = vunpack.c.l.b16 %v120
      %v165 = vunpack.c.l.b16 %v121
      %v166 = vunpack.c.l.b16 %v122
      %v167 = vunpack.c.l.b16 %v123
      %v168 = vpack.c.b16 %v153, %v152
      %v169 = vpack.c.b16 %v155, %v154
      %v170 = vpack.c.b16 %v157, %v156
      %v171 = vpack.c.b16 %v159, %v158
      %v172 = vpack.c.b16 %v161, %v160
      %v173 = vpack.c.b16 %v163, %v162
      %v174 = vpack.c.b16 %v165, %v164
      %v175 = vpack.c.b16 %v167, %v166
      %184 = vmatprep.subr.bf16.mxu0 0
      %185 = vmatpush1.bf16.msra.mxu0 %v168
      %186 = vmatprep.subr.bf16.mxu0 0
      %187 = vmatpush1.bf16.msra.mxu0 %v169
      %188 = vmatprep.subr.bf16.mxu0 0
      %189 = vmatpush1.bf16.msra.mxu0 %v170
      %190 = vmatprep.subr.bf16.mxu0 0
      %191 = vmatpush1.bf16.msra.mxu0 %v171
      %192 = vmatprep.subr.bf16.mxu0 0
      %193 = vmatpush1.bf16.msra.mxu0 %v172
      %194 = vmatprep.subr.bf16.mxu0 0
      %195 = vmatpush1.bf16.msra.mxu0 %v173
      %196 = vmatprep.subr.bf16.mxu0 0
      %197 = vmatpush1.bf16.msra.mxu0 %v174
      %198 = vmatprep.subr.bf16.mxu0 0
      %199 = vmatpush1.bf16.msra.mxu0 %v175
      %200 = vmatprep.subr.bf16.mxu0 0
      %201 = vmatpush1.bf16.msra.mxu0 0
      %202 = vmatprep.subr.bf16.mxu0 0
      %203 = vmatpush1.bf16.msra.mxu0 0
      %204 = vmatprep.subr.bf16.mxu0 0
      %205 = vmatpush1.bf16.msra.mxu0 0
      %206 = vmatprep.subr.bf16.mxu0 0
      %207 = vmatpush1.bf16.msra.mxu0 0
      %208 = vmatprep.subr.bf16.mxu0 0
      %209 = vmatpush1.bf16.msra.mxu0 0
      %210 = vmatprep.subr.bf16.mxu0 0
      %211 = vmatpush1.bf16.msra.mxu0 0
      %212 = vmatprep.subr.bf16.mxu0 0
      %213 = vmatpush1.bf16.msra.mxu0 0
      %214 = vmatprep.subr.bf16.mxu0 0
      %215 = vmatpush1.bf16.msra.mxu0 0
      %216 = vmatprep.mubr.bf16.mxu0 0
      %217 = vmatmul.mubr.bf16.gmra.mrb[0].mxu0 %v132
      %v218 = vpop.f32.mrb[0].mxu0
      %v219 = vadd.f32 0.0, %v218
      %v220 = vpop.f32.mrb[0].mxu0
      %v221 = vpop.f32.mrb[0].mxu0
      %v222 = vadd.f32 0.0, %v221
      %v223 = vpop.f32.mrb[0].mxu0
      %224 = vmatprep.mubr.bf16.mxu0 0
      %225 = vmatmul.mubr.bf16.gmra.mrb[0].mxu0 %v133
      %v226 = vpop.f32.mrb[0].mxu0
      %v227 = vadd.f32 0.0, %v226
      %v228 = vpop.f32.mrb[0].mxu0
      %v229 = vpop.f32.mrb[0].mxu0
      %v230 = vadd.f32 0.0, %v229
      %v231 = vpop.f32.mrb[0].mxu0
      %232 = vdwg.mxu0
      %233 = vst [vmem:[#allocation3] sm:$0xff] %v219
      %234 = vst [vmem:[#allocation3 + $0x8] sm:$0xff] %v222
      %235 = vst [vmem:[#allocation3 + $0x10] sm:$0xff] %v227
      %236 = vst [vmem:[#allocation3 + $0x18] sm:$0xff] %v230
    $region53: #{tpu_custom_call.1} parent=1 // pred_fallthru
      _
    %v237 = vld [vmem:[#allocation2] sm:$0xff]
    %v238 = vld [vmem:[#allocation2 + $0x8] sm:$0xff]
    %v239 = vld [vmem:[#allocation2 + $0x10] sm:$0xff]
    %v240 = vld [vmem:[#allocation2 + $0x18] sm:$0xff]
    %v241 = vld [vmem:[#allocation4] sm:$0xff]
    %v242 = vld [vmem:[#allocation4 + $0x8] sm:$0xf]
    %v243 = vld [vmem:[#allocation4 + $0xc] sm:$0xff]
    %v244 = vld [vmem:[#allocation4 + $0x14] sm:$0xf]
    %v245 = vld [vmem:[#allocation4 + $0x18] sm:$0xff]
    %v246 = vld [vmem:[#allocation4 + $0x20] sm:$0xf]
    %v247 = vld [vmem:[#allocation4 + $0x24] sm:$0xff]
    %v248 = vld [vmem:[#allocation4 + $0x2c] sm:$0xf]
    %v249 = vld [vmem:[#allocation7] sm:$0xf]
    %v250 = vld [vmem:[#allocation7 + $0x4] sm:$0xf]
    %v251 = vld [vmem:[#allocation7 + $0x8] sm:$0xf]
    %v252 = vld [vmem:[#allocation7 + $0xc] sm:$0xf]
    %v253 = vld [vmem:[#allocation7 + $0x10] sm:$0xf]
    %v254 = vld [vmem:[#allocation7 + $0x14] sm:$0xf]
    %v255 = vld [vmem:[#allocation7 + $0x18] sm:$0xf]
    %v256 = vld [vmem:[#allocation7 + $0x1c] sm:$0xf]
    %v257 = vld [vmem:[#allocation7 + $0x20] sm:$0xf]
    %v258 = vld [vmem:[#allocation7 + $0x24] sm:$0xf]
    %v259 = vld [vmem:[#allocation7 + $0x28] sm:$0xf]
    %v260 = vld [vmem:[#allocation7 + $0x2c] sm:$0xf]
    %v261 = vld [vmem:[#allocation7 + $0x30] sm:$0xf]
    %v262 = vld [vmem:[#allocation7 + $0x34] sm:$0xf]
    %v263 = vld [vmem:[#allocation7 + $0x38] sm:$0xf]
    %v264 = vld [vmem:[#allocation7 + $0x3c] sm:$0xf]
    %v265 = vld [vmem:[#allocation7 + $0x40] sm:$0xf]
    %v266 = vld [vmem:[#allocation7 + $0x44] sm:$0xf]
    %v267 = vld [vmem:[#allocation7 + $0x48] sm:$0xf]
    %v268 = vld [vmem:[#allocation7 + $0x4c] sm:$0xf]
    %v269 = vld [vmem:[#allocation7 + $0x50] sm:$0xf]
    %v270 = vld [vmem:[#allocation7 + $0x54] sm:$0xf]
    %v271 = vld [vmem:[#allocation7 + $0x58] sm:$0xf]
    %v272 = vld [vmem:[#allocation7 + $0x5c] sm:$0xf]
    %v273 = vld [vmem:[#allocation7 + $0x60] sm:$0xf]
    %v274 = vld [vmem:[#allocation7 + $0x64] sm:$0xf]
    %v275 = vld [vmem:[#allocation7 + $0x68] sm:$0xf]
    %v276 = vld [vmem:[#allocation7 + $0x6c] sm:$0xf]
    %v277 = vld [vmem:[#allocation7 + $0x70] sm:$0xf]
    %v278 = vld [vmem:[#allocation7 + $0x74] sm:$0xf]
    %v279 = vld [vmem:[#allocation7 + $0x78] sm:$0xf]
    %v280 = vld [vmem:[#allocation7 + $0x7c] sm:$0xf]
    %v281 = vld [vmem:[#allocation7 + $0x80] sm:$0xf]
    %v282 = vld [vmem:[#allocation7 + $0x84] sm:$0xf]
    %v283 = vld [vmem:[#allocation7 + $0x88] sm:$0xf]
    %v284 = vld [vmem:[#allocation7 + $0x8c] sm:$0xf]
    %v285 = vld [vmem:[#allocation7 + $0x90] sm:$0xf]
    %v286 = vld [vmem:[#allocation7 + $0x94] sm:$0xf]
    %v287 = vld [vmem:[#allocation7 + $0x98] sm:$0xf]
    %v288 = vld [vmem:[#allocation7 + $0x9c] sm:$0xf]
    %v289 = vld [vmem:[#allocation7 + $0xa0] sm:$0xf]
    %v290 = vld [vmem:[#allocation7 + $0xa4] sm:$0xf]
    %v291 = vld [vmem:[#allocation7 + $0xa8] sm:$0xf]
    %v292 = vld [vmem:[#allocation7 + $0xac] sm:$0xf]
    %v293 = vld [vmem:[#allocation7 + $0xb0] sm:$0xf]
    %v294 = vld [vmem:[#allocation7 + $0xb4] sm:$0xf]
    %v295 = vld [vmem:[#allocation7 + $0xb8] sm:$0xf]
    %v296 = vld [vmem:[#allocation7 + $0xbc] sm:$0xf]
    %v305 = vunpack.c.l.b16 %v241
    %v306 = vunpack.c.h.b16 %v241
    %v307 = vunpack.c.l.b16 %v242
    %v308 = vunpack.c.l.b16 %v243
    %v309 = vunpack.c.h.b16 %v243
    %v310 = vunpack.c.l.b16 %v244
    %v311 = vunpack.c.l.b16 %v245
    %v312 = vunpack.c.h.b16 %v245
    %v313 = vunpack.c.l.b16 %v246
    %v314 = vunpack.c.l.b16 %v247
    %v315 = vunpack.c.h.b16 %v247
    %v316 = vunpack.c.l.b16 %v248
    %v317 = vpack.c.b16 %v308, %v305
    %v318 = vpack.c.b16 %v309, %v306
    %v319 = vpack.c.b16 %v310, %v307
    %v320 = vpack.c.b16 %v314, %v311
    %v321 = vpack.c.b16 %v315, %v312
    %v322 = vpack.c.b16 %v316, %v313
    %v377 = vunpack.c.l.b16 %v249
    %v378 = vunpack.c.l.b16 %v250
    %v379 = vunpack.c.l.b16 %v251
    %v380 = vunpack.c.l.b16 %v252
    %v381 = vunpack.c.l.b16 %v253
    %v382 = vunpack.c.l.b16 %v254
    %v383 = vunpack.c.l.b16 %v255
    %v384 = vunpack.c.l.b16 %v256
    %v385 = vunpack.c.l.b16 %v257
    %v386 = vunpack.c.l.b16 %v258
    %v387 = vunpack.c.l.b16 %v259
    %v388 = vunpack.c.l.b16 %v260
    %v389 = vunpack.c.l.b16 %v261
    %v390 = vunpack.c.l.b16 %v262
    %v391 = vunpack.c.l.b16 %v263
    %v392 = vunpack.c.l.b16 %v264
    %v393 = vunpack.c.l.b16 %v265
    %v394 = vunpack.c.l.b16 %v266
    %v395 = vunpack.c.l.b16 %v267
    %v396 = vunpack.c.l.b16 %v268
    %v397 = vunpack.c.l.b16 %v269
    %v398 = vunpack.c.l.b16 %v270
    %v399 = vunpack.c.l.b16 %v271
    %v400 = vunpack.c.l.b16 %v272
    %v401 = vunpack.c.l.b16 %v273
    %v402 = vunpack.c.l.b16 %v274
    %v403 = vunpack.c.l.b16 %v275
    %v404 = vunpack.c.l.b16 %v276
    %v405 = vunpack.c.l.b16 %v277
    %v406 = vunpack.c.l.b16 %v278
    %v407 = vunpack.c.l.b16 %v279
    %v408 = vunpack.c.l.b16 %v280
    %v409 = vunpack.c.l.b16 %v281
    %v410 = vunpack.c.l.b16 %v282
    %v411 = vunpack.c.l.b16 %v283
    %v412 = vunpack.c.l.b16 %v284
    %v413 = vunpack.c.l.b16 %v285
    %v414 = vunpack.c.l.b16 %v286
    %v415 = vunpack.c.l.b16 %v287
    %v416 = vunpack.c.l.b16 %v288
    %v417 = vunpack.c.l.b16 %v289
    %v418 = vunpack.c.l.b16 %v290
    %v419 = vunpack.c.l.b16 %v291
    %v420 = vunpack.c.l.b16 %v292
    %v421 = vunpack.c.l.b16 %v293
    %v422 = vunpack.c.l.b16 %v294
    %v423 = vunpack.c.l.b16 %v295
    %v424 = vunpack.c.l.b16 %v296
    %v425 = vpack.c.b16 %v378, %v377
    %v426 = vpack.c.b16 %v380, %v379
    %v427 = vpack.c.b16 %v382, %v381
    %v428 = vpack.c.b16 %v384, %v383
    %v429 = vpack.c.b16 %v386, %v385
    %v430 = vpack.c.b16 %v388, %v387
    %v431 = vpack.c.b16 %v390, %v389
    %v432 = vpack.c.b16 %v392, %v391
    %v433 = vpack.c.b16 %v394, %v393
    %v434 = vpack.c.b16 %v396, %v395
    %v435 = vpack.c.b16 %v398, %v397
    %v436 = vpack.c.b16 %v400, %v399
    %v437 = vpack.c.b16 %v402, %v401
    %v438 = vpack.c.b16 %v404, %v403
    %v439 = vpack.c.b16 %v406, %v405
    %v440 = vpack.c.b16 %v408, %v407
    %v441 = vpack.c.b16 %v410, %v409
    %v442 = vpack.c.b16 %v412, %v411
    %v443 = vpack.c.b16 %v414, %v413
    %v444 = vpack.c.b16 %v416, %v415
    %v445 = vpack.c.b16 %v418, %v417
    %v446 = vpack.c.b16 %v420, %v419
    %v447 = vpack.c.b16 %v422, %v421
    %v448 = vpack.c.b16 %v424, %v423
    %473 = vmatprep.subr.bf16.mxu0 0
    %474 = vmatpush1.bf16.msra.mxu0 %v425
    %475 = vmatprep.subr.bf16.mxu0 0
    %476 = vmatpush1.bf16.msra.mxu0 %v426
    %477 = vmatprep.subr.bf16.mxu0 0
    %478 = vmatpush1.bf16.msra.mxu0 %v427
    %479 = vmatprep.subr.bf16.mxu0 0
    %480 = vmatpush1.bf16.msra.mxu0 %v428
    %481 = vmatprep.subr.bf16.mxu0 0
    %482 = vmatpush1.bf16.msra.mxu0 %v429
    %483 = vmatprep.subr.bf16.mxu0 0
    %484 = vmatpush1.bf16.msra.mxu0 %v430
    %485 = vmatprep.subr.bf16.mxu0 0
    %486 = vmatpush1.bf16.msra.mxu0 %v431
    %487 = vmatprep.subr.bf16.mxu0 0
    %488 = vmatpush1.bf16.msra.mxu0 %v432
    %489 = vmatprep.subr.bf16.mxu0 0
    %490 = vmatpush1.bf16.msra.mxu0 %v433
    %491 = vmatprep.subr.bf16.mxu0 0
    %492 = vmatpush1.bf16.msra.mxu0 %v434
    %493 = vmatprep.subr.bf16.mxu0 0
    %494 = vmatpush1.bf16.msra.mxu0 %v435
    %495 = vmatprep.subr.bf16.mxu0 0
    %496 = vmatpush1.bf16.msra.mxu0 %v436
    %497 = vmatprep.subr.bf16.mxu0 0
    %498 = vmatpush1.bf16.msra.mxu0 %v437
    %499 = vmatprep.subr.bf16.mxu0 0
    %500 = vmatpush1.bf16.msra.mxu0 %v438
    %501 = vmatprep.subr.bf16.mxu0 0
    %502 = vmatpush1.bf16.msra.mxu0 %v439
    %503 = vmatprep.subr.bf16.mxu0 0
    %504 = vmatpush1.bf16.msra.mxu0 %v440
    %505 = vmatprep.mubr.bf16.mxu0 %v318
    %506 = vmatmul.mubr.bf16.gmra.mrb[0].mxu0 %v317
    %v507 = vpop.f32.mrb[0].mxu0
    %v508 = vadd.f32 0.0, %v507
    %v509 = vpop.f32.mrb[0].mxu0
    %v510 = vpop.f32.mrb[0].mxu0
    %v511 = vadd.f32 0.0, %v510
    %v512 = vpop.f32.mrb[0].mxu0
    %513 = vmatprep.mubr.bf16.mxu0 %v321
    %514 = vmatmul.mubr.bf16.gmra.mrb[0].mxu0 %v320
    %v515 = vpop.f32.mrb[0].mxu0
    %v516 = vadd.f32 0.0, %v515
    %v517 = vpop.f32.mrb[0].mxu0
    %v518 = vpop.f32.mrb[0].mxu0
    %v519 = vadd.f32 0.0, %v518
    %v520 = vpop.f32.mrb[0].mxu0
    %521 = vdwg.mxu0
    %522 = vmatprep.subr.bf16.mxu0 0
    %523 = vmatpush1.bf16.msra.mxu0 %v441
    %524 = vmatprep.subr.bf16.mxu0 0
    %525 = vmatpush1.bf16.msra.mxu0 %v442
    %526 = vmatprep.subr.bf16.mxu0 0
    %527 = vmatpush1.bf16.msra.mxu0 %v443
    %528 = vmatprep.subr.bf16.mxu0 0
    %529 = vmatpush1.bf16.msra.mxu0 %v444
    %530 = vmatprep.subr.bf16.mxu0 0
    %531 = vmatpush1.bf16.msra.mxu0 %v445
    %532 = vmatprep.subr.bf16.mxu0 0
    %533 = vmatpush1.bf16.msra.mxu0 %v446
    %534 = vmatprep.subr.bf16.mxu0 0
    %535 = vmatpush1.bf16.msra.mxu0 %v447
    %536 = vmatprep.subr.bf16.mxu0 0
    %537 = vmatpush1.bf16.msra.mxu0 %v448
    %538 = vmatprep.subr.bf16.mxu0 0
    %539 = vmatpush1.bf16.msra.mxu0 0
    %540 = vmatprep.subr.bf16.mxu0 0
    %541 = vmatpush1.bf16.msra.mxu0 0
    %542 = vmatprep.subr.bf16.mxu0 0
    %543 = vmatpush1.bf16.msra.mxu0 0
    %544 = vmatprep.subr.bf16.mxu0 0
    %545 = vmatpush1.bf16.msra.mxu0 0
    %546 = vmatprep.subr.bf16.mxu0 0
    %547 = vmatpush1.bf16.msra.mxu0 0
    %548 = vmatprep.subr.bf16.mxu0 0
    %549 = vmatpush1.bf16.msra.mxu0 0
    %550 = vmatprep.subr.bf16.mxu0 0
    %551 = vmatpush1.bf16.msra.mxu0 0
    %552 = vmatprep.subr.bf16.mxu0 0
    %553 = vmatpush1.bf16.msra.mxu0 0
    %554 = vmatprep.mubr.bf16.mxu0 0
    %555 = vmatmul.mubr.bf16.gmra.mrb[0].mxu0 %v319
    %v556 = vpop.f32.mrb[0].mxu0
    %v557 = vadd.f32 %v508, %v556
    %v558 = vpop.f32.mrb[0].mxu0
    %v559 = vpop.f32.mrb[0].mxu0
    %v560 = vadd.f32 %v511, %v559
    %v561 = vpop.f32.mrb[0].mxu0
    %562 = vmatprep.mubr.bf16.mxu0 0
    %563 = vmatmul.mubr.bf16.gmra.mrb[0].mxu0 %v322
    %v564 = vpop.f32.mrb[0].mxu0
    %v565 = vadd.f32 %v516, %v564
    %v566 = vpop.f32.mrb[0].mxu0
    %v567 = vpop.f32.mrb[0].mxu0
    %v568 = vadd.f32 %v519, %v567
    %v569 = vpop.f32.mrb[0].mxu0
    %570 = vdwg.mxu0
    %v571 = vadd.f32 %v237, %v557
    %v572 = vadd.f32 %v238, %v560
    %v573 = vadd.f32 %v239, %v565
    %v574 = vadd.f32 %v240, %v568
    %575 = vst [vmem:[#allocation2] sm:$0xff] %v571
    %576 = vst [vmem:[#allocation2 + $0x8] sm:$0xff] %v572
    %577 = vst [vmem:[#allocation2 + $0x10] sm:$0xff] %v573
    %578 = vst [vmem:[#allocation2 + $0x18] sm:$0xff] %v574
    // Predicated region
    $region54: #{tpu_custom_call.1} parent=1 // pred_check
      %p579 = pneg %p96
    $region55: #{tpu_custom_call.1} parent=1 // pred_check_branch
      %581 = sbr.rel (%p579) target = $region57
    $region56: #{tpu_custom_call.1} parent=1 // pred_region
      %v582 = vld [vmem:[#allocation2] sm:$0xff]
      %v583 = vld [vmem:[#allocation2 + $0x8] sm:$0xff]
      %v584 = vld [vmem:[#allocation2 + $0x10] sm:$0xff]
      %v585 = vld [vmem:[#allocation2 + $0x18] sm:$0xff]
      %v586 = vld [vmem:[%s3] sm:$0xff]
      %v587 = vld [vmem:[%s3 + $0x8] sm:$0xff]
      %v588 = vld [vmem:[%s3 + $0x10] sm:$0xff]
      %v589 = vld [vmem:[%s3 + $0x18] sm:$0xff]
      %591 = vset.pattern.permute.xlu0 0
      %592 = vperm.xlu0 %591, %v586
      %v593 = vpop.permute.xlu0 %592
      %596 = vset.pattern.permute.xlu0 0
      %597 = vperm.xlu0 %596, %v587
      %v598 = vpop.permute.xlu0 %597
      %601 = vset.pattern.permute.xlu0 0
      %602 = vperm.xlu0 %601, %v588
      %v603 = vpop.permute.xlu0 %602
      %606 = vset.pattern.permute.xlu0 0
      %607 = vperm.xlu0 %606, %v589
      %v608 = vpop.permute.xlu0 %607
      %v610 = vmul.f32 %v582, %v593
      %v611 = vmul.f32 %v583, %v598
      %v612 = vmul.f32 %v584, %v603
      %v613 = vmul.f32 %v585, %v608
      %v614 = vpack.c.bf16 %v611, %v610
      %v615 = vpack.c.bf16 %v613, %v612
      %v616 = vld [vmem:[#allocation3] sm:$0xff]
      %v617 = vld [vmem:[#allocation3 + $0x8] sm:$0xff]
      %v618 = vld [vmem:[#allocation3 + $0x10] sm:$0xff]
      %v619 = vld [vmem:[#allocation3 + $0x18] sm:$0xff]
      %v620 = vld [vmem:[#allocation10] sm:$0xf]
      %v621 = vld [vmem:[#allocation10 + $0x4] sm:$0xf]
      %v622 = vld [vmem:[#allocation10 + $0x8] sm:$0xf]
      %v623 = vld [vmem:[#allocation10 + $0xc] sm:$0xf]
      %v624 = vld [vmem:[#allocation10 + $0x10] sm:$0xf]
      %v625 = vld [vmem:[#allocation10 + $0x14] sm:$0xf]
      %v626 = vld [vmem:[#allocation10 + $0x18] sm:$0xf]
      %v627 = vld [vmem:[#allocation10 + $0x1c] sm:$0xf]
      %v628 = vld [vmem:[#allocation10 + $0x20] sm:$0xf]
      %v629 = vld [vmem:[#allocation10 + $0x24] sm:$0xf]
      %v630 = vld [vmem:[#allocation10 + $0x28] sm:$0xf]
      %v631 = vld [vmem:[#allocation10 + $0x2c] sm:$0xf]
      %v632 = vld [vmem:[#allocation10 + $0x30] sm:$0xf]
      %v633 = vld [vmem:[#allocation10 + $0x34] sm:$0xf]
      %v634 = vld [vmem:[#allocation10 + $0x38] sm:$0xf]
      %v635 = vld [vmem:[#allocation10 + $0x3c] sm:$0xf]
      %v652 = vunpack.c.l.b16 %v620
      %v653 = vunpack.c.l.b16 %v621
      %v654 = vunpack.c.l.b16 %v622
      %v655 = vunpack.c.l.b16 %v623
      %v656 = vunpack.c.l.b16 %v624
      %v657 = vunpack.c.l.b16 %v625
      %v658 = vunpack.c.l.b16 %v626
      %v659 = vunpack.c.l.b16 %v627
      %v660 = vunpack.c.l.b16 %v628
      %v661 = vunpack.c.l.b16 %v629
      %v662 = vunpack.c.l.b16 %v630
      %v663 = vunpack.c.l.b16 %v631
      %v664 = vunpack.c.l.b16 %v632
      %v665 = vunpack.c.l.b16 %v633
      %v666 = vunpack.c.l.b16 %v634
      %v667 = vunpack.c.l.b16 %v635
      %v668 = vpack.c.b16 %v653, %v652
      %v669 = vpack.c.b16 %v655, %v654
      %v670 = vpack.c.b16 %v657, %v656
      %v671 = vpack.c.b16 %v659, %v658
      %v672 = vpack.c.b16 %v661, %v660
      %v673 = vpack.c.b16 %v663, %v662
      %v674 = vpack.c.b16 %v665, %v664
      %v675 = vpack.c.b16 %v667, %v666
      %684 = vmatprep.subr.bf16.mxu0 0
      %685 = vmatpush1.bf16.msra.mxu0 %v668
      %686 = vmatprep.subr.bf16.mxu0 0
      %687 = vmatpush1.bf16.msra.mxu0 %v669
      %688 = vmatprep.subr.bf16.mxu0 0
      %689 = vmatpush1.bf16.msra.mxu0 %v670
      %690 = vmatprep.subr.bf16.mxu0 0
      %691 = vmatpush1.bf16.msra.mxu0 %v671
      %692 = vmatprep.subr.bf16.mxu0 0
      %693 = vmatpush1.bf16.msra.mxu0 %v672
      %694 = vmatprep.subr.bf16.mxu0 0
      %695 = vmatpush1.bf16.msra.mxu0 %v673
      %696 = vmatprep.subr.bf16.mxu0 0
      %697 = vmatpush1.bf16.msra.mxu0 %v674
      %698 = vmatprep.subr.bf16.mxu0 0
      %699 = vmatpush1.bf16.msra.mxu0 %v675
      %700 = vmatprep.subr.bf16.mxu0 0
      %701 = vmatpush1.bf16.msra.mxu0 0
      %702 = vmatprep.subr.bf16.mxu0 0
      %703 = vmatpush1.bf16.msra.mxu0 0
      %704 = vmatprep.subr.bf16.mxu0 0
      %705 = vmatpush1.bf16.msra.mxu0 0
      %706 = vmatprep.subr.bf16.mxu0 0
      %707 = vmatpush1.bf16.msra.mxu0 0
      %708 = vmatprep.subr.bf16.mxu0 0
      %709 = vmatpush1.bf16.msra.mxu0 0
      %710 = vmatprep.subr.bf16.mxu0 0
      %711 = vmatpush1.bf16.msra.mxu0 0
      %712 = vmatprep.subr.bf16.mxu0 0
      %713 = vmatpush1.bf16.msra.mxu0 0
      %714 = vmatprep.subr.bf16.mxu0 0
      %715 = vmatpush1.bf16.msra.mxu0 0
      %716 = vmatprep.mubr.bf16.mxu0 0
      %717 = vmatmul.mubr.bf16.gmra.mrb[0].mxu0 %v614
      %v718 = vpop.f32.mrb[0].mxu0
      %v719 = vadd.f32 0.0, %v718
      %v720 = vpop.f32.mrb[0].mxu0
      %v721 = vpop.f32.mrb[0].mxu0
      %v722 = vadd.f32 0.0, %v721
      %v723 = vpop.f32.mrb[0].mxu0
      %724 = vmatprep.mubr.bf16.mxu0 0
      %725 = vmatmul.mubr.bf16.gmra.mrb[0].mxu0 %v615
      %v726 = vpop.f32.mrb[0].mxu0
      %v727 = vadd.f32 0.0, %v726
      %v728 = vpop.f32.mrb[0].mxu0
      %v729 = vpop.f32.mrb[0].mxu0
      %v730 = vadd.f32 0.0, %v729
      %v731 = vpop.f32.mrb[0].mxu0
      %732 = vdwg.mxu0
      %v733 = vadd.f32 %v616, %v719
      %v734 = vadd.f32 %v617, %v722
      %v735 = vadd.f32 %v618, %v727
      %v736 = vadd.f32 %v619, %v730
      %v737 = vmax.f32 %v733, 0.0
      %v738 = vmax.f32 %v734, 0.0
      %v739 = vmax.f32 %v735, 0.0
      %v740 = vmax.f32 %v736, 0.0
      %v741 = vpack.c.bf16 %v738, %v737
      %v742 = vpack.c.bf16 %v740, %v739
      %v743 = vld [vmem:[#allocation12] sm:$0xf]
      %v744 = vld [vmem:[#allocation12 + $0x4] sm:$0xf]
      %v745 = vld [vmem:[#allocation12 + $0x8] sm:$0xf]
      %v746 = vld [vmem:[#allocation12 + $0xc] sm:$0xf]
      %v747 = vld [vmem:[#allocation12 + $0x10] sm:$0xf]
      %v748 = vld [vmem:[#allocation12 + $0x14] sm:$0xf]
      %v749 = vld [vmem:[#allocation12 + $0x18] sm:$0xf]
      %v750 = vld [vmem:[#allocation12 + $0x1c] sm:$0xf]
      %v751 = vld [vmem:[#allocation12 + $0x20] sm:$0xf]
      %v752 = vld [vmem:[#allocation12 + $0x24] sm:$0xf]
      %v753 = vld [vmem:[#allocation12 + $0x28] sm:$0xf]
      %v754 = vld [vmem:[#allocation12 + $0x2c] sm:$0xf]
      %v755 = vld [vmem:[#allocation12 + $0x30] sm:$0xf]
      %v756 = vld [vmem:[#allocation12 + $0x34] sm:$0xf]
      %v757 = vld [vmem:[#allocation12 + $0x38] sm:$0xf]
      %v758 = vld [vmem:[#allocation12 + $0x3c] sm:$0xf]
      %v775 = vunpack.c.l.b16 %v743
      %v776 = vunpack.c.l.b16 %v744
      %v777 = vunpack.c.l.b16 %v745
      %v778 = vunpack.c.l.b16 %v746
      %v779 = vunpack.c.l.b16 %v747
      %v780 = vunpack.c.l.b16 %v748
      %v781 = vunpack.c.l.b16 %v749
      %v782 = vunpack.c.l.b16 %v750
      %v783 = vunpack.c.l.b16 %v751
      %v784 = vunpack.c.l.b16 %v752
      %v785 = vunpack.c.l.b16 %v753
      %v786 = vunpack.c.l.b16 %v754
      %v787 = vunpack.c.l.b16 %v755
      %v788 = vunpack.c.l.b16 %v756
      %v789 = vunpack.c.l.b16 %v757
      %v790 = vunpack.c.l.b16 %v758
      %v791 = vpack.c.b16 %v776, %v775
      %v792 = vpack.c.b16 %v778, %v777
      %v793 = vpack.c.b16 %v780, %v779
      %v794 = vpack.c.b16 %v782, %v781
      %v795 = vpack.c.b16 %v784, %v783
      %v796 = vpack.c.b16 %v786, %v785
      %v797 = vpack.c.b16 %v788, %v787
      %v798 = vpack.c.b16 %v790, %v789
      %807 = vmatprep.subr.bf16.mxu0 0
      %808 = vmatpush1.bf16.msra.mxu0 %v791
      %809 = vmatprep.subr.bf16.mxu0 0
      %810 = vmatpush1.bf16.msra.mxu0 %v792
      %811 = vmatprep.subr.bf16.mxu0 0
      %812 = vmatpush1.bf16.msra.mxu0 %v793
      %813 = vmatprep.subr.bf16.mxu0 0
      %814 = vmatpush1.bf16.msra.mxu0 %v794
      %815 = vmatprep.subr.bf16.mxu0 0
      %816 = vmatpush1.bf16.msra.mxu0 %v795
      %817 = vmatprep.subr.bf16.mxu0 0
      %818 = vmatpush1.bf16.msra.mxu0 %v796
      %819 = vmatprep.subr.bf16.mxu0 0
      %820 = vmatpush1.bf16.msra.mxu0 %v797
      %821 = vmatprep.subr.bf16.mxu0 0
      %822 = vmatpush1.bf16.msra.mxu0 %v798
      %823 = vmatprep.subr.bf16.mxu0 0
      %824 = vmatpush1.bf16.msra.mxu0 0
      %825 = vmatprep.subr.bf16.mxu0 0
      %826 = vmatpush1.bf16.msra.mxu0 0
      %827 = vmatprep.subr.bf16.mxu0 0
      %828 = vmatpush1.bf16.msra.mxu0 0
      %829 = vmatprep.subr.bf16.mxu0 0
      %830 = vmatpush1.bf16.msra.mxu0 0
      %831 = vmatprep.subr.bf16.mxu0 0
      %832 = vmatpush1.bf16.msra.mxu0 0
      %833 = vmatprep.subr.bf16.mxu0 0
      %834 = vmatpush1.bf16.msra.mxu0 0
      %835 = vmatprep.subr.bf16.mxu0 0
      %836 = vmatpush1.bf16.msra.mxu0 0
      %837 = vmatprep.subr.bf16.mxu0 0
      %838 = vmatpush1.bf16.msra.mxu0 0
      %839 = vmatprep.mubr.bf16.mxu0 0
      %840 = vmatmul.mubr.bf16.gmra.mrb[0].mxu0 %v741
      %v841 = vpop.f32.mrb[0].mxu0
      %v842 = vadd.f32 0.0, %v841
      %v843 = vpop.f32.mrb[0].mxu0
      %v844 = vpop.f32.mrb[0].mxu0
      %v845 = vadd.f32 0.0, %v844
      %v846 = vpop.f32.mrb[0].mxu0
      %847 = vmatprep.mubr.bf16.mxu0 0
      %848 = vmatmul.mubr.bf16.gmra.mrb[0].mxu0 %v742
      %v849 = vpop.f32.mrb[0].mxu0
      %v850 = vadd.f32 0.0, %v849
      %v851 = vpop.f32.mrb[0].mxu0
      %v852 = vpop.f32.mrb[0].mxu0
      %v853 = vadd.f32 0.0, %v852
      %v854 = vpop.f32.mrb[0].mxu0
      %855 = vdwg.mxu0
      %856 = vst [vmem:[#allocation13] sm:$0xff] %v842
      %857 = vst [vmem:[#allocation13 + $0x8] sm:$0xff] %v845
      %858 = vst [vmem:[#allocation13 + $0x10] sm:$0xff] %v850
      %859 = vst [vmem:[#allocation13 + $0x18] sm:$0xff] %v853
    $region57: #{tpu_custom_call.1} parent=1 // pred_fallthru
      _
    // Predicated region
    $region58: #{tpu_custom_call.1} parent=1 // pred_check
      _
    $region59: #{tpu_custom_call.1} parent=1 // pred_check_branch
      %861 = sbr.rel (0) target = $region61
    $region60: #{tpu_custom_call.1} parent=1 // pred_region
      %s863 = ssub.s32 512, 512
      %864 = vsyncadd [#allocation6], %s863
      %s865 = sshll.u32 [#allocation13], 4
      %s866 = int_to_ptr.vmem [resolvable:$true] %s865
      %871 = dma.vmem_to_hbm [thread:$0]  %s866, 512, %s7, [#allocation6], 128, 128, 8
    $region61: #{tpu_custom_call.1} parent=1 // pred_fallthru
      _
    // Predicated region
    $region62: #{tpu_custom_call.1} parent=1 // pred_check
      _
    $region63: #{tpu_custom_call.1} parent=1 // pred_check_branch
      %873 = sbr.rel (0) target = $region65
    $region64: #{tpu_custom_call.1} parent=1 // pred_region
      %874 = dma.done [#allocation6], 512
    $region65: #{tpu_custom_call.1} parent=1 // pred_fallthru
      _
    %875 = vsyncpa [#allocation5], 1
    %876 = vsyncpa [#allocation8], 1
    %877 = vsyncpa [#allocation11], 1
    %878 = vsyncpa [#allocation6], 1

</llo_original>
